<compile_context>
chip_gen: v6e
topology: v6e:2x2x1
jax: 0.10.0
libtpu: 0.0.40
codegen_flags: <defaults>
</compile_context>

<pallas_src>
import numpy as np

import jax
import jax.numpy as jnp
from jax.experimental import pallas as pl
from jax.experimental.pallas import tpu as pltpu


# ----------------------------------------------------------------------------
# init-time precompute (pure numpy, mirrors the torch __init__ FFT recipe)
# ----------------------------------------------------------------------------
def _hann_periodic(n):
    i = np.arange(n, dtype=np.float64)
    return 0.5 - 0.5 * np.cos(2.0 * np.pi * i / n)


def _blackman_periodic(n):
    i = np.arange(n, dtype=np.float64)
    return (0.42 - 0.5 * np.cos(2.0 * np.pi * i / n)
            + 0.08 * np.cos(4.0 * np.pi * i / n))


def _minphase_impulse(windowed_sinc, pad, n_fft):
    """Cepstral minimum-phase construction, mirroring the torch buffer code."""
    padded = np.pad(windowed_sinc, (pad, pad))
    spec = np.fft.fft(padded, n=n_fft)
    logf = np.log(spec + 1e-7)
    half = n_fft // 2
    ceps = np.fft.ifft(np.concatenate([logf[:half + 1], logf[1:half][::-1]]))
    cr = ceps.real.copy()
    ci = ceps.imag.copy()
    ci[0] *= -1.0
    cr[1:half] *= 2.0
    ci[1:half] *= -2.0
    ci[half] *= -1.0
    cr[half + 1:] = 0.0
    ci[half + 1:] = 0.0
    mp = np.fft.ifft(np.exp(np.fft.fft(cr + 1j * ci))).real
    mp = np.roll(mp, half - 1)[:half]
    return mp  # length n_fft // 2


def _dft_matrices(W):
    """Real rFFT / irFFT expressed as matmul matrices (torch.stft/istft math)."""
    F = W // 2 + 1
    n = np.arange(W, dtype=np.float64)[:, None]
    f = np.arange(F, dtype=np.float64)[None, :]
    ang = 2.0 * np.pi * n * f / W
    Cf = np.cos(ang)                               # (W, F): real = x @ Cf
    Sf = -np.sin(ang)                              # (W, F): imag = x @ Sf
    wgt = np.where((np.arange(F) == 0) | (np.arange(F) == W // 2), 1.0, 2.0)
    IC = (wgt[:, None] * np.cos(ang.T)) / W        # (F, W)
    IS = (-wgt[:, None] * np.sin(ang.T)) / W       # (F, W)
    return Cf, Sf, IC, IS


def build_params(sampling_rate, block_size, win_length, n_unit, n_hidden,
                 noise_seed=289):
    W = int(win_length)
    H = int(block_size)
    F = W // 2 + 1
    Fpad = ((F + 127) // 128) * 128                # lane-dense frequency axis
    assert W == 2 * H, "fused framing/OLA fold assumes win_length == 2*block_size"

    window = _hann_periodic(W)

    # static noise buffer (torch used its own Generator; deterministic numpy here)
    rs = np.random.RandomState(noise_seed)
    static_noise_t = rs.random_sample(W * 127).astype(np.float64) * 2.0 - 1.0

    # minimum-phase windowed sinc (harmonic path)
    phase = np.linspace(-(W - 1) * 0.5, W * 0.5, W)
    ws = np.sinc(phase) * _blackman_periodic(W)
    mp = _minphase_impulse(ws, W // 2, 2 * W)                       # length W
    wsinc = np.fft.rfft(mp * _hann_periodic(2 * W)[W:])             # (F,) complex

    # minimum-phase windowed sinc (noise-envelope path)
    ws_e = np.sinc(np.linspace(-(H // 2 - 1) * 0.5, (H // 2) * 0.5, H // 2)) \
        * _blackman_periodic(H // 2)
    mp_e = _minphase_impulse(ws_e, H // 4, H)                       # length H//2
    wsinc_env = np.fft.rfft(np.pad(mp_e, (0, W - H // 2)))          # (F,) complex

    Cf, Sf, IC, IS = _dft_matrices(W)

    # ---- forward matrix: windowed DFT with static complex spectra folded in.
    # column layout per frame-shift r: [ct_real | ct_imag | nt_real | nt_imag]
    # row layout: rows 0..H-1 act on the combtooth half of a signal block,
    #             rows H..2H-1 on the noise half.
    a, b = wsinc.real, wsinc.imag
    CH = Cf * a[None, :] - Sf * b[None, :]
    SH = Cf * b[None, :] + Sf * a[None, :]
    a2, b2 = wsinc_env.real, wsinc_env.imag
    CN = (Cf * a2[None, :] - Sf * b2[None, :]) / H                  # 1/block_size folded
    SN = (Cf * b2[None, :] + Sf * a2[None, :]) / H
    wCH = window[:, None] * CH
    wSH = window[:, None] * SH
    wCN = window[:, None] * CN
    wSN = window[:, None] * SN
    fwd_mat = np.zeros((2, 2 * H, 4 * Fpad), np.float32)
    for r in range(2):
        rows = slice(r * H, (r + 1) * H)
        fwd_mat[r, 0:H, 0:F] = wCH[rows]
        fwd_mat[r, 0:H, Fpad:Fpad + F] = wSH[rows]
        fwd_mat[r, H:2 * H, 2 * Fpad:2 * Fpad + F] = wCN[rows]
        fwd_mat[r, H:2 * H, 3 * Fpad:3 * Fpad + F] = wSN[rows]

    # ---- inverse matrix: irFFT + synthesis window + OLA + 1/sum(win^2) folded.
    # input column layout: [srr(frame j) | sii(frame j) | srr(frame j+1) | sii(frame j+1)]
    ICw = IC * window[None, :]
    ISw = IS * window[None, :]
    Nh = window[:H] ** 2 + window[H:] ** 2                          # OLA window envelope
    inv_mat = np.zeros((4 * Fpad, H), np.float32)
    inv_mat[0:F, :] = ICw[:, H:] / Nh[None, :]
    inv_mat[Fpad:Fpad + F, :] = ISw[:, H:] / Nh[None, :]
    inv_mat[2 * Fpad:2 * Fpad + F, :] = ICw[:, :H] / Nh[None, :]
    inv_mat[3 * Fpad:3 * Fpad + F, :] = ISw[:, :H] / Nh[None, :]

    # deterministic stand-in weights for unit2ctrl
    # TODO(synk): Unit2ControlGE2E source not provided; replaced by a 2-layer MLP
    #             (run in plain XLA) with the same ctrl split-map output sizes.
    out_dim = 4 * F + H // 4        # harm_mag, harm_phase, noise_mag, noise_phase, noise_env
    in_dim = n_unit + 3             # units + f0 + phase + volume
    rs2 = np.random.RandomState(0)
    W1 = (rs2.standard_normal((in_dim, n_hidden)) * 0.02).astype(np.float32)
    b1 = np.zeros((n_hidden,), np.float32)
    W2 = (rs2.standard_normal((n_hidden, out_dim)) * 0.02).astype(np.float32)
    b2 = np.zeros((out_dim,), np.float32)

    return dict(
        sampling_rate=float(sampling_rate),
        block_size=H,
        win_length=W,
        n_freq=F,
        n_freq_padded=Fpad,
        f0_input_variance=0.1,
        noise_env_size_downsamples=4,
        static_noise_t=jnp.asarray(static_noise_t, jnp.float32),
        fwd_mat=jnp.asarray(fwd_mat, jnp.float32),
        inv_mat=jnp.asarray(inv_mat, jnp.float32),
        W1=jnp.asarray(W1), b1=jnp.asarray(b1),
        W2=jnp.asarray(W2), b2=jnp.asarray(b2),
    )


# ----------------------------------------------------------------------------
# fused Pallas kernel: framing -> windowed DFT -> spectral filters -> iDFT+OLA
# ----------------------------------------------------------------------------
def _make_spectral_kernel(T, H, Fpad):
    T1 = T + 1

    def kernel(sig_ref, ctrl_ref, fwd_ref, inv_ref, out_ref):
        # sig_ref : (1, T+2, 2H)   blockified padded [combtooth | noise] signal
        # ctrl_ref: (1, T1, 4*Fpad) packed [harm_mag | harm_phase | noise_mag | noise_phase]
        # fwd_ref : (2, 2H, 4*Fpad) windowed block-diagonal DFT (wsinc, 1/H folded)
        # inv_ref : (4*Fpad, H)     iDFT + synth window + OLA + 1/sum(win^2) folded
        # out_ref : (1, T, H)       OLA'd output blocks
        def filtered(row0):
            # spectra of frames row0 .. row0+T-1 for both branches in one pass
            lhs0 = sig_ref[0, pl.ds(row0, T), :]          # (T, 2H)
            lhs1 = sig_ref[0, pl.ds(row0 + 1, T), :]
            spec = (jnp.dot(lhs0, fwd_ref[0], preferred_element_type=jnp.float32)
                    + jnp.dot(lhs1, fwd_ref[1], preferred_element_type=jnp.float32))
            ctrl = ctrl_ref[0, pl.ds(row0, T), :]         # (T, 4*Fpad)
            cr = spec[:, 0 * Fpad:1 * Fpad]
            ci = spec[:, 1 * Fpad:2 * Fpad]
            nr = spec[:, 2 * Fpad:3 * Fpad]
            ni = spec[:, 3 * Fpad:4 * Fpad]
            hmag = jnp.exp(ctrl[:, 0 * Fpad:1 * Fpad])
            hphi = jnp.pi * ctrl[:, 1 * Fpad:2 * Fpad]
            nmag = jnp.exp(ctrl[:, 2 * Fpad:3 * Fpad])    # 1/block_size folded into fwd
            nphi = jnp.pi * ctrl[:, 3 * Fpad:4 * Fpad]
            hr = hmag * jnp.cos(hphi)
            hi = hmag * jnp.sin(hphi)
            qr = nmag * jnp.cos(nphi)
            qi = nmag * jnp.sin(nphi)
            srr = cr * hr - ci * hi + nr * qr - ni * qi
            sii = cr * hi + ci * hr + nr * qi + ni * qr
            return srr, sii

        srr_lo, sii_lo = filtered(0)   # frames j   (contribute via window half n = H+h)
        srr_hi, sii_hi = filtered(1)   # frames j+1 (contribute via window half n = h)
        # 128-lane-aligned concat -> single fused inverse-DFT/OLA matmul
        s_all = jnp.concatenate([srr_lo, sii_lo, srr_hi, sii_hi], axis=-1)  # (T, 4*Fpad)
        out_ref[0, :, :] = jnp.dot(s_all, inv_ref[...],
                                   preferred_element_type=jnp.float32)      # (T, H)

    return kernel


def spectral_synth_ola(sig, ctrl, fwd_mat, inv_mat, *, T, H, Fpad):
    B = sig.shape[0]
    T1 = T + 1
    kernel = _make_spectral_kernel(T, H, Fpad)
    return pl.pallas_call(
        kernel,
        out_shape=jax.ShapeDtypeStruct((B, T, H), jnp.float32),
        grid=(B,),
        in_specs=[
            pl.BlockSpec((1, T + 2, 2 * H), lambda b: (b, 0, 0)),
            pl.BlockSpec((1, T1, 4 * Fpad), lambda b: (b, 0, 0)),
            pl.BlockSpec((2, 2 * H, 4 * Fpad), lambda b: (0, 0, 0)),
            pl.BlockSpec((4 * Fpad, H), lambda b: (0, 0)),
        ],
        out_specs=pl.BlockSpec((1, T, H), lambda b: (b, 0, 0)),
        compiler_params=pltpu.CompilerParams(
            dimension_semantics=("parallel",)),
    )(sig, ctrl, fwd_mat, inv_mat)


# ----------------------------------------------------------------------------
# forward (mirrors CombSubMinimumNoisedPhase.forward with default flags)
# ----------------------------------------------------------------------------
def comb_sub_forward(units_frames, f0_frames, volume_frames, params, rng_key):
    B, T, _ = units_frames.shape
    H = params["block_size"]
    W = params["win_length"]
    F = params["n_freq"]
    Fpad = params["n_freq_padded"]
    sr = params["sampling_rate"]
    fiv = params["f0_input_variance"]
    ds = params["noise_env_size_downsamples"]
    L = T * H
    T1 = T + 1

    # ---- f0 upsample + variance + phase accumulation (XLA glue) -------------
    f0 = jnp.repeat(f0_frames[:, :, 0], H, axis=1)[:, :, None]        # (B, L, 1)
    f0_variance = jax.random.uniform(rng_key, f0.shape, jnp.float32) * fiv
    f0 = f0 * (2.0 ** (-fiv / 12.0)) * (2.0 ** (f0_variance / 12.0))
    # TODO(synk): torch uses float64 cumsum at inference; float32 on TPU here.
    x = jnp.cumsum(f0 / sr, axis=1)
    x = x - jnp.round(x)
    phase_frames = 2.0 * jnp.pi * x[:, ::H, :]                         # (B, T, 1)

    # ---- unit2ctrl stand-in (plain XLA; two tiny matmuls, fused by XLA) ------
    feat = jnp.concatenate(
        [units_frames, f0_frames, phase_frames, volume_frames], axis=-1)
    hdn = jnp.tanh(jnp.einsum('btu,uh->bth', feat.astype(jnp.float32),
                              params["W1"]) + params["b1"])
    ctrl = jnp.einsum('bth,ho->bto', hdn, params["W2"]) + params["b2"]  # (B, T, 4F+H/ds)
    hm = ctrl[..., 0 * F:1 * F]
    hp = ctrl[..., 1 * F:2 * F]
    nm = ctrl[..., 2 * F:3 * F]
    nph = ctrl[..., 3 * F:4 * F]
    nem = ctrl[..., 4 * F:4 * F + H // ds]                              # (B, T, H/ds)

    # pack controls lane-dense: pad F->Fpad, dup last frame, concat into one array
    def pad_f(a):
        return jnp.pad(a, ((0, 0), (0, 0), (0, Fpad - F)))
    ctrl_packed = jnp.concatenate([pad_f(hm), pad_f(hp), pad_f(nm), pad_f(nph)],
                                  axis=-1)                              # (B, T, 4*Fpad)
    ctrl_packed = jnp.concatenate([ctrl_packed, ctrl_packed[:, -1:, :]], axis=1)

    # ---- combtooth (flattened roll, exactly like torch.Tensor.roll w/o dims;
    #      the one-sample cross-batch wrap matches the torch reference) -------
    x_flat = x.reshape(-1)
    rolled = jnp.roll(x_flat, 1).reshape(x.shape)
    combtooth = jnp.where(rolled - x < 0.0, 1.0, 0.0)[:, :, 0]          # (B, L)

    # ---- noise with linear-interp envelope (mirrors torch incl. its extra /ds)
    static_noise = params["static_noise_t"]
    reps = L // static_noise.shape[0] + 1
    noise_t = jnp.tile(static_noise[None, :], (B, reps))[:, :L]
    env_flat = (jnp.log10(jnp.maximum(nem, 0.0) * 9.0 + 1.0) + 1.0
                ).reshape(B, T * (H // ds))
    env_ext = jnp.concatenate([env_flat, env_flat[:, -1:]], axis=1)
    slopes = env_ext[:, 1:] - env_ext[:, :-1]
    ridx = jnp.tile(jnp.arange(ds, dtype=jnp.float32) / ds, env_flat.shape[1])
    noise_env = (jnp.repeat(env_flat, ds, axis=1)
                 + jnp.repeat(slopes, ds, axis=1) * ridx[None, :] / ds)
    noise_t = noise_t * noise_env

    # ---- center pad (zeros) + blockify + interleave [ct | nt] per H-block ----
    pad = W // 2                                                        # == H
    ct_blocks = jnp.pad(combtooth, ((0, 0), (pad, pad))).reshape(B, T + 2, H)
    nt_blocks = jnp.pad(noise_t, ((0, 0), (pad, pad))).reshape(B, T + 2, H)
    sig = jnp.concatenate([ct_blocks, nt_blocks], axis=-1).astype(jnp.float32)

    # ---- fused Pallas kernel: DFT + filters + iDFT + overlap-add -------------
    out_blocks = spectral_synth_ola(
        sig, ctrl_packed.astype(jnp.float32),
        params["fwd_mat"], params["inv_mat"],
        T=T, H=H, Fpad=Fpad)                                            # (B, T, H)

    return out_blocks.reshape(B, L)                                     # (B, L)


# ----------------------------------------------------------------------------
if __name__ == "__main__":
    sampling_rate = 16000
    block_size = 32
    win_length = 64
    n_unit = 32
    n_hidden = 32
    B = 2
    n_frames = 8

    params = build_params(sampling_rate, block_size, win_length,
                          n_unit, n_hidden)

    key = jax.random.PRNGKey(0)
    ku, kf, kv, kr = jax.random.split(key, 4)
    units_frames = jax.random.normal(ku, (B, n_frames, n_unit), jnp.float32)
    f0_frames = jax.random.uniform(kf, (B, n_frames, 1), jnp.float32,
                                   minval=100.0, maxval=400.0)
    volume_frames = jax.random.uniform(kv, (B, n_frames, 1), jnp.float32)

    signal = comb_sub_forward(units_frames, f0_frames, volume_frames,
                              params, kr)
    signal = jax.block_until_ready(signal)
    assert signal.shape == (B, n_frames * block_size)
    assert bool(jnp.all(jnp.isfinite(signal)))
    print("KERNEL_OK")
</pallas_src>

<mosaic_0001>
module attributes {stable_mosaic.version = 11 : i64} {
  func.func @kernel(%arg0: i32, %arg1: memref<1x10x64xf32, #tpu.memory_space<vmem>>, %arg2: memref<1x9x512xf32, #tpu.memory_space<vmem>>, %arg3: memref<2x64x512xf32, #tpu.memory_space<vmem>>, %arg4: memref<512x32xf32, #tpu.memory_space<vmem>>, %arg5: memref<1x8x32xf32, #tpu.memory_space<vmem>>) attributes {dimension_semantics = [#tpu.dimension_semantics<parallel>], iteration_bounds = array<i64: 2>, scalar_prefetch = 0 : i64, scratch_operands = 0 : i64, tpu.core_type = #tpu.core_type<tc>, window_params = [{transform_indices = @transform_0, window_bounds = array<i64: 1, 10, 64>}, {transform_indices = @transform_1, window_bounds = array<i64: 1, 9, 512>}, {pipeline_mode = #tpu.pipeline_mode<synchronous>, transform_indices = @transform_2, window_bounds = array<i64: 2, 64, 512>}, {pipeline_mode = #tpu.pipeline_mode<synchronous>, transform_indices = @transform_3, window_bounds = array<i64: 512, 32>}, {transform_indices = @transform_4, window_bounds = array<i64: 1, 8, 32>}]} {
    %c0 = arith.constant 0 : index
    %c0_0 = arith.constant 0 : index
    %c0_1 = arith.constant 0 : index
    %0 = vector.load %arg1[%c0, %c0_0, %c0_1] : memref<1x10x64xf32, #tpu.memory_space<vmem>>, vector<1x8x64xf32>
    %1 = vector.shape_cast %0 : vector<1x8x64xf32> to vector<8x64xf32>
    %c0_2 = arith.constant 0 : index
    %c1 = arith.constant 1 : index
    %c0_3 = arith.constant 0 : index
    %2 = vector.load %arg1[%c0_2, %c1, %c0_3] : memref<1x10x64xf32, #tpu.memory_space<vmem>>, vector<1x8x64xf32>
    %3 = vector.shape_cast %2 : vector<1x8x64xf32> to vector<8x64xf32>
    %c0_4 = arith.constant 0 : index
    %c0_5 = arith.constant 0 : index
    %c0_6 = arith.constant 0 : index
    %4 = vector.load %arg3[%c0_4, %c0_5, %c0_6] : memref<2x64x512xf32, #tpu.memory_space<vmem>>, vector<1x64x512xf32>
    %5 = vector.shape_cast %4 : vector<1x64x512xf32> to vector<64x512xf32>
    %cst = arith.constant dense<0.000000e+00> : vector<8x512xf32>
    %6 = tpu.matmul %1, %5, %cst {dimension_numbers = #tpu.dot_dimension_numbers<[1], [0], [0], [1], [0, 0, 1, 1], [], []>} : vector<8x64xf32>, vector<64x512xf32>, vector<8x512xf32> -> vector<8x512xf32>
    %c1_7 = arith.constant 1 : index
    %c0_8 = arith.constant 0 : index
    %c0_9 = arith.constant 0 : index
    %7 = vector.load %arg3[%c1_7, %c0_8, %c0_9] : memref<2x64x512xf32, #tpu.memory_space<vmem>>, vector<1x64x512xf32>
    %8 = vector.shape_cast %7 : vector<1x64x512xf32> to vector<64x512xf32>
    %cst_10 = arith.constant dense<0.000000e+00> : vector<8x512xf32>
    %9 = tpu.matmul %3, %8, %cst_10 {dimension_numbers = #tpu.dot_dimension_numbers<[1], [0], [0], [1], [0, 0, 1, 1], [], []>} : vector<8x64xf32>, vector<64x512xf32>, vector<8x512xf32> -> vector<8x512xf32>
    %10 = arith.addf %6, %9 : vector<8x512xf32>
    %c0_11 = arith.constant 0 : index
    %c0_12 = arith.constant 0 : index
    %c0_13 = arith.constant 0 : index
    %11 = vector.load %arg2[%c0_11, %c0_12, %c0_13] : memref<1x9x512xf32, #tpu.memory_space<vmem>>, vector<1x8x512xf32>
    %12 = vector.shape_cast %11 : vector<1x8x512xf32> to vector<8x512xf32>
    %13 = vector.extract_strided_slice %10 {offsets = [0, 0], sizes = [8, 128], strides = [1, 1]} : vector<8x512xf32> to vector<8x128xf32>
    %14 = vector.extract_strided_slice %10 {offsets = [0, 128], sizes = [8, 128], strides = [1, 1]} : vector<8x512xf32> to vector<8x128xf32>
    %15 = vector.extract_strided_slice %10 {offsets = [0, 256], sizes = [8, 128], strides = [1, 1]} : vector<8x512xf32> to vector<8x128xf32>
    %16 = vector.extract_strided_slice %10 {offsets = [0, 384], sizes = [8, 128], strides = [1, 1]} : vector<8x512xf32> to vector<8x128xf32>
    %17 = vector.extract_strided_slice %12 {offsets = [0, 0], sizes = [8, 128], strides = [1, 1]} : vector<8x512xf32> to vector<8x128xf32>
    %18 = math.exp %17 : vector<8x128xf32>
    %19 = vector.extract_strided_slice %12 {offsets = [0, 128], sizes = [8, 128], strides = [1, 1]} : vector<8x512xf32> to vector<8x128xf32>
    %cst_14 = arith.constant 3.14159274 : f32
    %20 = vector.broadcast %cst_14 : f32 to vector<8x128xf32>
    %21 = arith.mulf %20, %19 : vector<8x128xf32>
    %22 = vector.extract_strided_slice %12 {offsets = [0, 256], sizes = [8, 128], strides = [1, 1]} : vector<8x512xf32> to vector<8x128xf32>
    %23 = math.exp %22 : vector<8x128xf32>
    %24 = vector.extract_strided_slice %12 {offsets = [0, 384], sizes = [8, 128], strides = [1, 1]} : vector<8x512xf32> to vector<8x128xf32>
    %cst_15 = arith.constant 3.14159274 : f32
    %25 = vector.broadcast %cst_15 : f32 to vector<8x128xf32>
    %26 = arith.mulf %25, %24 : vector<8x128xf32>
    %27 = math.cos %21 : vector<8x128xf32>
    %28 = arith.mulf %18, %27 : vector<8x128xf32>
    %29 = math.sin %21 : vector<8x128xf32>
    %30 = arith.mulf %18, %29 : vector<8x128xf32>
    %31 = math.cos %26 : vector<8x128xf32>
    %32 = arith.mulf %23, %31 : vector<8x128xf32>
    %33 = math.sin %26 : vector<8x128xf32>
    %34 = arith.mulf %23, %33 : vector<8x128xf32>
    %35 = arith.mulf %13, %28 : vector<8x128xf32>
    %36 = arith.mulf %14, %30 : vector<8x128xf32>
    %37 = arith.subf %35, %36 : vector<8x128xf32>
    %38 = arith.mulf %15, %32 : vector<8x128xf32>
    %39 = arith.addf %37, %38 : vector<8x128xf32>
    %40 = arith.mulf %16, %34 : vector<8x128xf32>
    %41 = arith.subf %39, %40 : vector<8x128xf32>
    %42 = arith.mulf %13, %30 : vector<8x128xf32>
    %43 = arith.mulf %14, %28 : vector<8x128xf32>
    %44 = arith.addf %42, %43 : vector<8x128xf32>
    %45 = arith.mulf %15, %34 : vector<8x128xf32>
    %46 = arith.addf %44, %45 : vector<8x128xf32>
    %47 = arith.mulf %16, %32 : vector<8x128xf32>
    %48 = arith.addf %46, %47 : vector<8x128xf32>
    %c0_16 = arith.constant 0 : index
    %c1_17 = arith.constant 1 : index
    %c0_18 = arith.constant 0 : index
    %49 = vector.load %arg1[%c0_16, %c1_17, %c0_18] : memref<1x10x64xf32, #tpu.memory_space<vmem>>, vector<1x8x64xf32>
    %50 = vector.shape_cast %49 : vector<1x8x64xf32> to vector<8x64xf32>
    %c0_19 = arith.constant 0 : index
    %c2 = arith.constant 2 : index
    %c0_20 = arith.constant 0 : index
    %51 = vector.load %arg1[%c0_19, %c2, %c0_20] : memref<1x10x64xf32, #tpu.memory_space<vmem>>, vector<1x8x64xf32>
    %52 = vector.shape_cast %51 : vector<1x8x64xf32> to vector<8x64xf32>
    %c0_21 = arith.constant 0 : index
    %c0_22 = arith.constant 0 : index
    %c0_23 = arith.constant 0 : index
    %53 = vector.load %arg3[%c0_21, %c0_22, %c0_23] : memref<2x64x512xf32, #tpu.memory_space<vmem>>, vector<1x64x512xf32>
    %54 = vector.shape_cast %53 : vector<1x64x512xf32> to vector<64x512xf32>
    %cst_24 = arith.constant dense<0.000000e+00> : vector<8x512xf32>
    %55 = tpu.matmul %50, %54, %cst_24 {dimension_numbers = #tpu.dot_dimension_numbers<[1], [0], [0], [1], [0, 0, 1, 1], [], []>} : vector<8x64xf32>, vector<64x512xf32>, vector<8x512xf32> -> vector<8x512xf32>
    %c1_25 = arith.constant 1 : index
    %c0_26 = arith.constant 0 : index
    %c0_27 = arith.constant 0 : index
    %56 = vector.load %arg3[%c1_25, %c0_26, %c0_27] : memref<2x64x512xf32, #tpu.memory_space<vmem>>, vector<1x64x512xf32>
    %57 = vector.shape_cast %56 : vector<1x64x512xf32> to vector<64x512xf32>
    %cst_28 = arith.constant dense<0.000000e+00> : vector<8x512xf32>
    %58 = tpu.matmul %52, %57, %cst_28 {dimension_numbers = #tpu.dot_dimension_numbers<[1], [0], [0], [1], [0, 0, 1, 1], [], []>} : vector<8x64xf32>, vector<64x512xf32>, vector<8x512xf32> -> vector<8x512xf32>
    %59 = arith.addf %55, %58 : vector<8x512xf32>
    %c0_29 = arith.constant 0 : index
    %c1_30 = arith.constant 1 : index
    %c0_31 = arith.constant 0 : index
    %60 = vector.load %arg2[%c0_29, %c1_30, %c0_31] : memref<1x9x512xf32, #tpu.memory_space<vmem>>, vector<1x8x512xf32>
    %61 = vector.shape_cast %60 : vector<1x8x512xf32> to vector<8x512xf32>
    %62 = vector.extract_strided_slice %59 {offsets = [0, 0], sizes = [8, 128], strides = [1, 1]} : vector<8x512xf32> to vector<8x128xf32>
    %63 = vector.extract_strided_slice %59 {offsets = [0, 128], sizes = [8, 128], strides = [1, 1]} : vector<8x512xf32> to vector<8x128xf32>
    %64 = vector.extract_strided_slice %59 {offsets = [0, 256], sizes = [8, 128], strides = [1, 1]} : vector<8x512xf32> to vector<8x128xf32>
    %65 = vector.extract_strided_slice %59 {offsets = [0, 384], sizes = [8, 128], strides = [1, 1]} : vector<8x512xf32> to vector<8x128xf32>
    %66 = vector.extract_strided_slice %61 {offsets = [0, 0], sizes = [8, 128], strides = [1, 1]} : vector<8x512xf32> to vector<8x128xf32>
    %67 = math.exp %66 : vector<8x128xf32>
    %68 = vector.extract_strided_slice %61 {offsets = [0, 128], sizes = [8, 128], strides = [1, 1]} : vector<8x512xf32> to vector<8x128xf32>
    %cst_32 = arith.constant 3.14159274 : f32
    %69 = vector.broadcast %cst_32 : f32 to vector<8x128xf32>
    %70 = arith.mulf %69, %68 : vector<8x128xf32>
    %71 = vector.extract_strided_slice %61 {offsets = [0, 256], sizes = [8, 128], strides = [1, 1]} : vector<8x512xf32> to vector<8x128xf32>
    %72 = math.exp %71 : vector<8x128xf32>
    %73 = vector.extract_strided_slice %61 {offsets = [0, 384], sizes = [8, 128], strides = [1, 1]} : vector<8x512xf32> to vector<8x128xf32>
    %cst_33 = arith.constant 3.14159274 : f32
    %74 = vector.broadcast %cst_33 : f32 to vector<8x128xf32>
    %75 = arith.mulf %74, %73 : vector<8x128xf32>
    %76 = math.cos %70 : vector<8x128xf32>
    %77 = arith.mulf %67, %76 : vector<8x128xf32>
    %78 = math.sin %70 : vector<8x128xf32>
    %79 = arith.mulf %67, %78 : vector<8x128xf32>
    %80 = math.cos %75 : vector<8x128xf32>
    %81 = arith.mulf %72, %80 : vector<8x128xf32>
    %82 = math.sin %75 : vector<8x128xf32>
    %83 = arith.mulf %72, %82 : vector<8x128xf32>
    %84 = arith.mulf %62, %77 : vector<8x128xf32>
    %85 = arith.mulf %63, %79 : vector<8x128xf32>
    %86 = arith.subf %84, %85 : vector<8x128xf32>
    %87 = arith.mulf %64, %81 : vector<8x128xf32>
    %88 = arith.addf %86, %87 : vector<8x128xf32>
    %89 = arith.mulf %65, %83 : vector<8x128xf32>
    %90 = arith.subf %88, %89 : vector<8x128xf32>
    %91 = arith.mulf %62, %79 : vector<8x128xf32>
    %92 = arith.mulf %63, %77 : vector<8x128xf32>
    %93 = arith.addf %91, %92 : vector<8x128xf32>
    %94 = arith.mulf %64, %83 : vector<8x128xf32>
    %95 = arith.addf %93, %94 : vector<8x128xf32>
    %96 = arith.mulf %65, %81 : vector<8x128xf32>
    %97 = arith.addf %95, %96 : vector<8x128xf32>
    %98 = tpu.concatenate %41, %48, %90, %97 in 1 : vector<8x128xf32>, vector<8x128xf32>, vector<8x128xf32>, vector<8x128xf32> -> vector<8x512xf32>
    %c0_34 = arith.constant 0 : index
    %c0_35 = arith.constant 0 : index
    %99 = vector.load %arg4[%c0_34, %c0_35] : memref<512x32xf32, #tpu.memory_space<vmem>>, vector<512x32xf32>
    %cst_36 = arith.constant dense<0.000000e+00> : vector<8x32xf32>
    %100 = tpu.matmul %98, %99, %cst_36 {dimension_numbers = #tpu.dot_dimension_numbers<[1], [0], [0], [1], [0, 0, 1, 1], [], []>} : vector<8x512xf32>, vector<512x32xf32>, vector<8x32xf32> -> vector<8x32xf32>
    %c0_37 = arith.constant 0 : index
    %c0_38 = arith.constant 0 : index
    %c0_39 = arith.constant 0 : index
    %101 = vector.load %arg5[%c0_37, %c0_38, %c0_39] : memref<1x8x32xf32, #tpu.memory_space<vmem>>, vector<1x8x32xf32>
    %102 = vector.shape_cast %101 : vector<1x8x32xf32> to vector<8x32xf32>
    %103 = vector.shape_cast %100 : vector<8x32xf32> to vector<1x8x32xf32>
    tpu.vector_store %arg5[%c0_37, %c0_38, %c0_39], %103 {strides = array<i32>} : memref<1x8x32xf32, #tpu.memory_space<vmem>>, vector<1x8x32xf32>,
    return
  }
  func.func @transform_0(%arg0: i32) -> (i32, i32, i32) {
    %c0_i32 = arith.constant 0 : i32
    %c0_i32_0 = arith.constant 0 : i32
    %c0_i32_1 = arith.constant 0 : i32
    return %arg0, %c0_i32, %c0_i32_0 : i32, i32, i32
  }
  func.func @transform_1(%arg0: i32) -> (i32, i32, i32) {
    %c0_i32 = arith.constant 0 : i32
    %c0_i32_0 = arith.constant 0 : i32
    %c0_i32_1 = arith.constant 0 : i32
    return %arg0, %c0_i32, %c0_i32_0 : i32, i32, i32
  }
  func.func @transform_2(%arg0: i32) -> (i32, i32, i32) {
    %c0_i32 = arith.constant 0 : i32
    %c0_i32_0 = arith.constant 0 : i32
    %c0_i32_1 = arith.constant 0 : i32
    %c0_i32_2 = arith.constant 0 : i32
    return %c0_i32, %c0_i32_0, %c0_i32_1 : i32, i32, i32
  }
  func.func @transform_3(%arg0: i32) -> (i32, i32) {
    %c0_i32 = arith.constant 0 : i32
    %c0_i32_0 = arith.constant 0 : i32
    %c0_i32_1 = arith.constant 0 : i32
    return %c0_i32, %c0_i32_0 : i32, i32
  }
  func.func @transform_4(%arg0: i32) -> (i32, i32, i32) {
    %c0_i32 = arith.constant 0 : i32
    %c0_i32_0 = arith.constant 0 : i32
    %c0_i32_1 = arith.constant 0 : i32
    return %arg0, %c0_i32, %c0_i32_0 : i32, i32, i32
  }
}

</mosaic_0001>

<llo_original>
// kernel: tpu_custom_call.1
$region0: #{tpu_custom_call.1}
  #allocation0 [shape = 'u32[]', space=smem, size = 0x4, offset = 0x4, fixed_abs, tag = 'smem constant byte address 0x4 - core index']
  #allocation1 [shape = 'u32[144,128]{1,0:T(1,128)}', space=vmem, size = 0x12000, scoped, tag = 'internal scratch']
  %s0 = inlined_call_operand.vmem [shape: f32[2,10,64], index: 0, kind: input, shape index: {}]
  %s1 = inlined_call_operand.vmem [shape: f32[2,9,512], index: 1, kind: input, shape index: {}]
  %s2 = inlined_call_operand.vmem [shape: f32[2,64,512], index: 2, kind: input, shape index: {}]
  %s3 = inlined_call_operand.vmem [shape: f32[512,32], index: 3, kind: input, shape index: {}]
  %s4 = inlined_call_operand.hbm [shape: f32[2,8,32], index: 4, kind: output, shape index: {}]
  %s5 = sld [smem:[#allocation0]]
  $region49: #{tpu_custom_call.1} parent=0
    _
  %s7 = ssub.s32 1, %s5
  %s8 = scalar_select 0, %s7, %s5
  $region1: #{tpu_custom_call.1} parent=0
    #allocation2 [shape = 'u8[8192]{0}', space=vmem, size = 0x2000, scoped, tag = 'output window, operand 0']
    #allocation3 [shape = 's32[2]{0}', space=sflag, size = 0x8, scoped, tag = 'scoped memory for tpu_custom_call.1']
    %9 = vsyncpa [#allocation3], 0
    %s10 = scalar_lea.sflag [#allocation3], 1
    %11 = vsyncpa %s10, 0
    loop: start=0, step=1, limit=4
    $region2: #{tpu_custom_call.1} parent=1 // loop_pre_header
      _
    $region3: #{tpu_custom_call.1} parent=1 // loop_header
      %s13 = sphi 0, %s17
      %p14 = scmp.ge.s32.totalorder %s13, 4
      %s23 = sphi 0, %s25
      %s26 = sphi 0, %s23
      %s27 = sphi 0, %s26
      %s43 = sphi 0, %s27
      %s49 = sphi 0, %s51
      %s52 = sphi 0, %s49
      %s53 = sphi 0, %s52
      %s69 = sphi 0, %s53
      %s73 = sphi 0, %s73
      %s75 = sphi 0, %s73
      %s76 = sphi 0, %s75
      %s90 = sphi 0, %s76
      %s94 = sphi 0, %s94
      %s96 = sphi 0, %s94
      %s97 = sphi 0, %s96
      %s111 = sphi 0, %s97
      %s117 = sphi 0, %s119
      %s120 = sphi 0, %s117
      %s121 = sphi 0, %s120
      %s137 = sphi 0, %s121
    $region4: #{tpu_custom_call.1} parent=1 // loop_header_branch
      %16 = sbr.rel (%p14) target = $region8
    $region5: #{tpu_custom_call.1} parent=1 // loop_body
      %s18 = ssub.s32 %s13, 1
      %s19 = ssub.s32 %s13, 2
      %s20 = sadd.s32 %s13, 1
      %s21 = ssub.s32 %s13, %s20
      %p22 = scmp.eq.s32.totalorder %s21, 0
      %s24 = sadd.s32 %s23, 1
      %s25 = scalar_select %p22, %s23, %s24
      %p28 = pneg %p22
      %p29 = scmp.eq.s32.totalorder %s13, 1
      %p30 = por %p28, %p29
      %p31 = scmp.ne.s32.totalorder %s23, %s26
      %p32 = scmp.eq.s32.totalorder %s13, 0
      %p33 = por %p31, %p32
      %p34 = scmp.ne.s32.totalorder %s23, %s26
      %p35 = scmp.eq.s32.totalorder %s18, 1
      %p36 = por %p34, %p35
      %p37 = scmp.ne.s32.totalorder %s26, %s27
      %p38 = scmp.eq.s32.totalorder %s18, 0
      %p39 = por %p37, %p38
      %p40 = scmp.ne.s32.totalorder %s26, %s27
      %p41 = scmp.eq.s32.totalorder %s19, 1
      %p42 = por %p40, %p41
      %p44 = scmp.ne.s32.totalorder %s27, %s43
      %p45 = scmp.eq.s32.totalorder %s19, 0
      %p46 = por %p44, %p45
      %s47 = ssub.s32 %s13, %s20
      %p48 = scmp.eq.s32.totalorder %s47, 0
      %s50 = sadd.s32 %s49, 1
      %s51 = scalar_select %p48, %s49, %s50
      %p54 = pneg %p48
      %p55 = scmp.eq.s32.totalorder %s13, 1
      %p56 = por %p54, %p55
      %p57 = scmp.ne.s32.totalorder %s49, %s52
      %p58 = scmp.eq.s32.totalorder %s13, 0
      %p59 = por %p57, %p58
      %p60 = scmp.ne.s32.totalorder %s49, %s52
      %p61 = scmp.eq.s32.totalorder %s18, 1
      %p62 = por %p60, %p61
      %p63 = scmp.ne.s32.totalorder %s52, %s53
      %p64 = scmp.eq.s32.totalorder %s18, 0
      %p65 = por %p63, %p64
      %p66 = scmp.ne.s32.totalorder %s52, %s53
      %p67 = scmp.eq.s32.totalorder %s19, 1
      %p68 = por %p66, %p67
      %p70 = scmp.ne.s32.totalorder %s53, %s69
      %p71 = scmp.eq.s32.totalorder %s19, 0
      %p72 = por %p70, %p71
      %s74 = sadd.s32 %s73, 1
      %p77 = scmp.eq.s32.totalorder %s13, 1
      %p78 = scmp.ne.s32.totalorder %s73, %s75
      %p79 = scmp.eq.s32.totalorder %s13, 0
      %p80 = por %p78, %p79
      %p81 = scmp.ne.s32.totalorder %s73, %s75
      %p82 = scmp.eq.s32.totalorder %s18, 1
      %p83 = por %p81, %p82
      %p84 = scmp.ne.s32.totalorder %s75, %s76
      %p85 = scmp.eq.s32.totalorder %s18, 0
      %p86 = por %p84, %p85
      %p87 = scmp.ne.s32.totalorder %s75, %s76
      %p88 = scmp.eq.s32.totalorder %s19, 1
      %p89 = por %p87, %p88
      %p91 = scmp.ne.s32.totalorder %s76, %s90
      %p92 = scmp.eq.s32.totalorder %s19, 0
      %p93 = por %p91, %p92
      %s95 = sadd.s32 %s94, 1
      %p98 = scmp.eq.s32.totalorder %s13, 1
      %p99 = scmp.ne.s32.totalorder %s94, %s96
      %p100 = scmp.eq.s32.totalorder %s13, 0
      %p101 = por %p99, %p100
      %p102 = scmp.ne.s32.totalorder %s94, %s96
      %p103 = scmp.eq.s32.totalorder %s18, 1
      %p104 = por %p102, %p103
      %p105 = scmp.ne.s32.totalorder %s96, %s97
      %p106 = scmp.eq.s32.totalorder %s18, 0
      %p107 = por %p105, %p106
      %p108 = scmp.ne.s32.totalorder %s96, %s97
      %p109 = scmp.eq.s32.totalorder %s19, 1
      %p110 = por %p108, %p109
      %p112 = scmp.ne.s32.totalorder %s97, %s111
      %p113 = scmp.eq.s32.totalorder %s19, 0
      %p114 = por %p112, %p113
      %s115 = ssub.s32 %s13, %s20
      %p116 = scmp.eq.s32.totalorder %s115, 0
      %s118 = sadd.s32 %s117, 1
      %s119 = scalar_select %p116, %s117, %s118
      %p122 = pneg %p116
      %p123 = scmp.eq.s32.totalorder %s13, 1
      %p124 = por %p122, %p123
      %p125 = scmp.ne.s32.totalorder %s117, %s120
      %p126 = scmp.eq.s32.totalorder %s13, 0
      %p127 = por %p125, %p126
      %p128 = scmp.ne.s32.totalorder %s117, %s120
      %p129 = scmp.eq.s32.totalorder %s18, 1
      %p130 = por %p128, %p129
      %p131 = scmp.ne.s32.totalorder %s120, %s121
      %p132 = scmp.eq.s32.totalorder %s18, 0
      %p133 = por %p131, %p132
      %p134 = scmp.ne.s32.totalorder %s120, %s121
      %p135 = scmp.eq.s32.totalorder %s19, 1
      %p136 = por %p134, %p135
      %p138 = scmp.ne.s32.totalorder %s121, %s137
      %p139 = scmp.eq.s32.totalorder %s19, 0
      %p140 = por %p138, %p139
      %p141 = scmp.le.s32.totalorder 1, %s13
      %p142 = scmp.lt.s32.totalorder %s13, 3
      %p143 = pnand %p141, %p142
      %p144 = pneg %p143
      // Predicated region
      $region9: #{tpu_custom_call.1} parent=5 // pred_check
        _
      $region10: #{tpu_custom_call.1} parent=5 // pred_check_branch
        %146 = sbr.rel (%p143) target = $region12
      $region11: #{tpu_custom_call.1} parent=5 // pred_region
        %s147 = ssub.s32 %s13, 1
        // Predicated region
        $region13: #{tpu_custom_call.1} parent=11 // pred_check
          %p148 = pneg %p86
        $region14: #{tpu_custom_call.1} parent=11 // pred_check_branch
          %150 = sbr.rel (%p148) target = $region16
        $region15: #{tpu_custom_call.1} parent=11 // pred_region
          _
        $region16: #{tpu_custom_call.1} parent=11 // pred_fallthru
          _
        // Predicated region
        $region17: #{tpu_custom_call.1} parent=11 // pred_check
          %p151 = pneg %p107
        $region18: #{tpu_custom_call.1} parent=11 // pred_check_branch
          %153 = sbr.rel (%p151) target = $region20
        $region19: #{tpu_custom_call.1} parent=11 // pred_region
          _
        $region20: #{tpu_custom_call.1} parent=11 // pred_fallthru
          _
      $region12: #{tpu_custom_call.1} parent=5 // pred_fallthru
        _
      %p154 = scmp.lt.s32.totalorder %s13, 2
      // Predicated region
      $region21: #{tpu_custom_call.1} parent=5 // pred_check
        %p155 = pneg %p154
      $region22: #{tpu_custom_call.1} parent=5 // pred_check_branch
        %157 = sbr.rel (%p155) target = $region24
      $region23: #{tpu_custom_call.1} parent=5 // pred_region
        // Predicated region
        $region25: #{tpu_custom_call.1} parent=23 // pred_check
          %p158 = pneg %p33
        $region26: #{tpu_custom_call.1} parent=23 // pred_check_branch
          %160 = sbr.rel (%p158) target = $region28
        $region27: #{tpu_custom_call.1} parent=23 // pred_region
          %p161 = scmp.lt.s32.totalorder %s13, 1
          %s162 = scalar_select %p161, %s13, 1
          %s163 = smul.addr %s162, 2
          %s164 = smul.addr %s163, 8
          %s165 = scalar_lea.vmem %s0, %s164
        $region28: #{tpu_custom_call.1} parent=23 // pred_fallthru
          _
        // Predicated region
        $region29: #{tpu_custom_call.1} parent=23 // pred_check
          %p166 = pneg %p59
        $region30: #{tpu_custom_call.1} parent=23 // pred_check_branch
          %168 = sbr.rel (%p166) target = $region32
        $region31: #{tpu_custom_call.1} parent=23 // pred_region
          %p169 = scmp.lt.s32.totalorder %s13, 1
          %s170 = scalar_select %p169, %s13, 1
          %s171 = smul.addr %s170, 8
          %s172 = smul.addr %s171, 8
          %s173 = scalar_lea.vmem %s1, %s172
        $region32: #{tpu_custom_call.1} parent=23 // pred_fallthru
          _
      $region24: #{tpu_custom_call.1} parent=5 // pred_fallthru
        _
      %p174 = scmp.le.s32.totalorder 1, %s13
      %p175 = scmp.lt.s32.totalorder %s13, 3
      %p176 = pnand %p174, %p175
      %p177 = pneg %p176
      // Predicated region
      $region33: #{tpu_custom_call.1} parent=5 // pred_check
        _
      $region34: #{tpu_custom_call.1} parent=5 // pred_check_branch
        %179 = sbr.rel (%p176) target = $region36
      $region35: #{tpu_custom_call.1} parent=5 // pred_region
        %s180 = ssub.s32 %s13, 1
        %p181 = scmp.lt.s32.totalorder %s18, 1
        %s182 = scalar_select %p181, %s18, 1
        %s183 = smul.addr %s182, 2
        %s184 = smul.addr %s183, 8
        %s185 = scalar_lea.vmem %s0, %s184
        %p186 = pneg %p39
        %p187 = pneg %p36
        %p188 = scmp.lt.s32.totalorder %s18, 1
        %s189 = scalar_select %p188, %s18, 1
        %s190 = smul.addr %s189, 8
        %s191 = smul.addr %s190, 8
        %s192 = scalar_lea.vmem %s1, %s191
        %p193 = pneg %p65
        %p194 = pneg %p62
        %p195 = pneg %p86
        %p196 = pneg %p83
        %p197 = pneg %p107
        %p198 = pneg %p104
        %p199 = pneg %p133
        %p200 = pneg %p130
        %s201 = sand.u32 %s120, 1
        %s202 = scalar_lea.sflag [#allocation3], %s201
        %s203 = sand.u32 %s120, 1
        %s204 = smul.addr %s203, 8
        %s205 = scalar_lea.vmem [#allocation2], %s204
        %p206 = scmp.lt.s32.totalorder %s18, 1
        %s207 = scalar_select %p206, %s18, 1
        %s208 = smul.addr %s207, 2
        %s209 = smul.addr %s208, 8
        %s210 = scalar_lea.vmem %s0, %s209
        %p211 = scmp.lt.s32.totalorder %s18, 1
        %s212 = scalar_select %p211, %s18, 1
        %s213 = smul.addr %s212, 8
        %s214 = smul.addr %s213, 8
        %s215 = scalar_lea.vmem %s1, %s214
        %v216 = vld [vmem:[%s210] sm:$0xff]
        %v217 = vld [vmem:[%s210 + $0x1] sm:$0xff]
        %v218 = vld [vmem:[%s2] sm:$0xff]
        %v219 = vld [vmem:[%s2 + $0x8] sm:$0xff]
        %v220 = vld [vmem:[%s2 + $0x10] sm:$0xff]
        %v221 = vld [vmem:[%s2 + $0x18] sm:$0xff]
        %v222 = vld [vmem:[%s2 + $0x20] sm:$0xff]
        %v223 = vld [vmem:[%s2 + $0x28] sm:$0xff]
        %v224 = vld [vmem:[%s2 + $0x30] sm:$0xff]
        %v225 = vld [vmem:[%s2 + $0x38] sm:$0xff]
        %v226 = vld [vmem:[%s2 + $0x40] sm:$0xff]
        %v227 = vld [vmem:[%s2 + $0x48] sm:$0xff]
        %v228 = vld [vmem:[%s2 + $0x50] sm:$0xff]
        %v229 = vld [vmem:[%s2 + $0x58] sm:$0xff]
        %v230 = vld [vmem:[%s2 + $0x60] sm:$0xff]
        %v231 = vld [vmem:[%s2 + $0x68] sm:$0xff]
        %v232 = vld [vmem:[%s2 + $0x70] sm:$0xff]
        %v233 = vld [vmem:[%s2 + $0x78] sm:$0xff]
        %v234 = vld [vmem:[%s2 + $0x80] sm:$0xff]
        %v235 = vld [vmem:[%s2 + $0x88] sm:$0xff]
        %v236 = vld [vmem:[%s2 + $0x90] sm:$0xff]
        %v237 = vld [vmem:[%s2 + $0x98] sm:$0xff]
        %v238 = vld [vmem:[%s2 + $0xa0] sm:$0xff]
        %v239 = vld [vmem:[%s2 + $0xa8] sm:$0xff]
        %v240 = vld [vmem:[%s2 + $0xb0] sm:$0xff]
        %v241 = vld [vmem:[%s2 + $0xb8] sm:$0xff]
        %v242 = vld [vmem:[%s2 + $0xc0] sm:$0xff]
        %v243 = vld [vmem:[%s2 + $0xc8] sm:$0xff]
        %v244 = vld [vmem:[%s2 + $0xd0] sm:$0xff]
        %v245 = vld [vmem:[%s2 + $0xd8] sm:$0xff]
        %v246 = vld [vmem:[%s2 + $0xe0] sm:$0xff]
        %v247 = vld [vmem:[%s2 + $0xe8] sm:$0xff]
        %v248 = vld [vmem:[%s2 + $0xf0] sm:$0xff]
        %v249 = vld [vmem:[%s2 + $0xf8] sm:$0xff]
        %s250 = scalar_lea.vmem %s2, 256
        %v251 = vld [vmem:[%s250] sm:$0xff]
        %v252 = vld [vmem:[%s250 + $0x8] sm:$0xff]
        %v253 = vld [vmem:[%s250 + $0x10] sm:$0xff]
        %v254 = vld [vmem:[%s250 + $0x18] sm:$0xff]
        %v255 = vld [vmem:[%s250 + $0x20] sm:$0xff]
        %v256 = vld [vmem:[%s250 + $0x28] sm:$0xff]
        %v257 = vld [vmem:[%s250 + $0x30] sm:$0xff]
        %v258 = vld [vmem:[%s250 + $0x38] sm:$0xff]
        %v259 = vld [vmem:[%s250 + $0x40] sm:$0xff]
        %v260 = vld [vmem:[%s250 + $0x48] sm:$0xff]
        %v261 = vld [vmem:[%s250 + $0x50] sm:$0xff]
        %v262 = vld [vmem:[%s250 + $0x58] sm:$0xff]
        %v263 = vld [vmem:[%s250 + $0x60] sm:$0xff]
        %v264 = vld [vmem:[%s250 + $0x68] sm:$0xff]
        %v265 = vld [vmem:[%s250 + $0x70] sm:$0xff]
        %v266 = vld [vmem:[%s250 + $0x78] sm:$0xff]
        %v267 = vld [vmem:[%s250 + $0x80] sm:$0xff]
        %v268 = vld [vmem:[%s250 + $0x88] sm:$0xff]
        %v269 = vld [vmem:[%s250 + $0x90] sm:$0xff]
        %v270 = vld [vmem:[%s250 + $0x98] sm:$0xff]
        %v271 = vld [vmem:[%s250 + $0xa0] sm:$0xff]
        %v272 = vld [vmem:[%s250 + $0xa8] sm:$0xff]
        %v273 = vld [vmem:[%s250 + $0xb0] sm:$0xff]
        %v274 = vld [vmem:[%s250 + $0xb8] sm:$0xff]
        %v275 = vld [vmem:[%s250 + $0xc0] sm:$0xff]
        %v276 = vld [vmem:[%s250 + $0xc8] sm:$0xff]
        %v277 = vld [vmem:[%s250 + $0xd0] sm:$0xff]
        %v278 = vld [vmem:[%s250 + $0xd8] sm:$0xff]
        %v279 = vld [vmem:[%s250 + $0xe0] sm:$0xff]
        %v280 = vld [vmem:[%s250 + $0xe8] sm:$0xff]
        %v281 = vld [vmem:[%s250 + $0xf0] sm:$0xff]
        %v282 = vld [vmem:[%s250 + $0xf8] sm:$0xff]
        %vm283 = vcmask 523264
        %v285 = vsel %vm283, %v217, 0
        %287 = vmatprep.subr.mxu0 0.0
        %288 = vmatpush1.msra.mxu0 0.0
        %289 = vmatprep.subr.mxu0 0.0
        %290 = vmatpush1.msra.mxu0 0.0
        %291 = vmatprep.subr.mxu0 0.0
        %292 = vmatpush1.msra.mxu0 0.0
        %293 = vmatprep.subr.mxu0 0.0
        %294 = vmatpush1.msra.mxu0 0.0
        %295 = vmatprep.subr.mxu0 0.0
        %296 = vmatpush1.msra.mxu0 0.0
        %297 = vmatprep.subr.mxu0 0.0
        %298 = vmatpush1.msra.mxu0 0.0
        %299 = vmatprep.subr.mxu0 0.0
        %300 = vmatpush1.msra.mxu0 0.0
        %301 = vmatprep.subr.mxu0 0.0
        %302 = vmatpush1.msra.mxu0 0.0
        %303 = vmatprep.subr.mxu0 %v280
        %304 = vmatpush1.msra.mxu0 %v279
        %305 = vmatprep.subr.mxu0 %v276
        %306 = vmatpush1.msra.mxu0 %v275
        %307 = vmatprep.subr.mxu0 %v272
        %308 = vmatpush1.msra.mxu0 %v271
        %309 = vmatprep.subr.mxu0 %v268
        %310 = vmatpush1.msra.mxu0 %v267
        %311 = vmatprep.subr.mxu0 %v264
        %312 = vmatpush1.msra.mxu0 %v263
        %313 = vmatprep.subr.mxu0 %v260
        %314 = vmatpush1.msra.mxu0 %v259
        %315 = vmatprep.subr.mxu0 %v256
        %316 = vmatpush1.msra.mxu0 %v255
        %317 = vmatprep.subr.mxu0 %v252
        %318 = vmatpush1.msra.mxu0 %v251
        %319 = vmatprep.subr.mxu0 0.0
        %320 = vmatpush2.msra.mxu0 0.0
        %321 = vmatprep.subr.mxu0 0.0
        %322 = vmatpush2.msra.mxu0 0.0
        %323 = vmatprep.subr.mxu0 0.0
        %324 = vmatpush2.msra.mxu0 0.0
        %325 = vmatprep.subr.mxu0 0.0
        %326 = vmatpush2.msra.mxu0 0.0
        %327 = vmatprep.subr.mxu0 0.0
        %328 = vmatpush2.msra.mxu0 0.0
        %329 = vmatprep.subr.mxu0 0.0
        %330 = vmatpush2.msra.mxu0 0.0
        %331 = vmatprep.subr.mxu0 0.0
        %332 = vmatpush2.msra.mxu0 0.0
        %333 = vmatprep.subr.mxu0 0.0
        %334 = vmatpush2.msra.mxu0 0.0
        %335 = vmatprep.subr.mxu0 0.0
        %336 = vmatpush2.msra.mxu0 0.0
        %337 = vmatprep.subr.mxu0 0.0
        %338 = vmatpush2.msra.mxu0 0.0
        %339 = vmatprep.subr.mxu0 0.0
        %340 = vmatpush2.msra.mxu0 0.0
        %341 = vmatprep.subr.mxu0 0.0
        %342 = vmatpush2.msra.mxu0 0.0
        %343 = vmatprep.subr.mxu0 0.0
        %344 = vmatpush2.msra.mxu0 0.0
        %345 = vmatprep.subr.mxu0 0.0
        %346 = vmatpush2.msra.mxu0 0.0
        %347 = vmatprep.subr.mxu0 0.0
        %348 = vmatpush2.msra.mxu0 0.0
        %349 = vmatprep.subr.mxu0 0.0
        %350 = vmatpush2.msra.mxu0 0.0
        %351 = vmatprep.mubr.f32.mxu0 0.0
        %352 = vmatmul.mubr.f32.gmra.mxu0 %v285
        %v353 = vpop.f32.mrf.mxu0
        %v354 = vadd.f32 0.0, %v353
        %v355 = vpop.f32.mrf.mxu0
        %v356 = vadd.f32 0.0, %v355
        %357 = vdwg.mxu0
        %358 = vmatprep.subr.mxu0 0.0
        %359 = vmatpush1.msra.mxu0 0.0
        %360 = vmatprep.subr.mxu0 0.0
        %361 = vmatpush1.msra.mxu0 0.0
        %362 = vmatprep.subr.mxu0 0.0
        %363 = vmatpush1.msra.mxu0 0.0
        %364 = vmatprep.subr.mxu0 0.0
        %365 = vmatpush1.msra.mxu0 0.0
        %366 = vmatprep.subr.mxu0 0.0
        %367 = vmatpush1.msra.mxu0 0.0
        %368 = vmatprep.subr.mxu0 0.0
        %369 = vmatpush1.msra.mxu0 0.0
        %370 = vmatprep.subr.mxu0 0.0
        %371 = vmatpush1.msra.mxu0 0.0
        %372 = vmatprep.subr.mxu0 0.0
        %373 = vmatpush1.msra.mxu0 0.0
        %374 = vmatprep.subr.mxu0 %v282
        %375 = vmatpush1.msra.mxu0 %v281
        %376 = vmatprep.subr.mxu0 %v278
        %377 = vmatpush1.msra.mxu0 %v277
        %378 = vmatprep.subr.mxu0 %v274
        %379 = vmatpush1.msra.mxu0 %v273
        %380 = vmatprep.subr.mxu0 %v270
        %381 = vmatpush1.msra.mxu0 %v269
        %382 = vmatprep.subr.mxu0 %v266
        %383 = vmatpush1.msra.mxu0 %v265
        %384 = vmatprep.subr.mxu0 %v262
        %385 = vmatpush1.msra.mxu0 %v261
        %386 = vmatprep.subr.mxu0 %v258
        %387 = vmatpush1.msra.mxu0 %v257
        %388 = vmatprep.subr.mxu0 %v254
        %389 = vmatpush1.msra.mxu0 %v253
        %390 = vmatprep.subr.mxu0 0.0
        %391 = vmatpush2.msra.mxu0 0.0
        %392 = vmatprep.subr.mxu0 0.0
        %393 = vmatpush2.msra.mxu0 0.0
        %394 = vmatprep.subr.mxu0 0.0
        %395 = vmatpush2.msra.mxu0 0.0
        %396 = vmatprep.subr.mxu0 0.0
        %397 = vmatpush2.msra.mxu0 0.0
        %398 = vmatprep.subr.mxu0 0.0
        %399 = vmatpush2.msra.mxu0 0.0
        %400 = vmatprep.subr.mxu0 0.0
        %401 = vmatpush2.msra.mxu0 0.0
        %402 = vmatprep.subr.mxu0 0.0
        %403 = vmatpush2.msra.mxu0 0.0
        %404 = vmatprep.subr.mxu0 0.0
        %405 = vmatpush2.msra.mxu0 0.0
        %406 = vmatprep.subr.mxu0 0.0
        %407 = vmatpush2.msra.mxu0 0.0
        %408 = vmatprep.subr.mxu0 0.0
        %409 = vmatpush2.msra.mxu0 0.0
        %410 = vmatprep.subr.mxu0 0.0
        %411 = vmatpush2.msra.mxu0 0.0
        %412 = vmatprep.subr.mxu0 0.0
        %413 = vmatpush2.msra.mxu0 0.0
        %414 = vmatprep.subr.mxu0 0.0
        %415 = vmatpush2.msra.mxu0 0.0
        %416 = vmatprep.subr.mxu0 0.0
        %417 = vmatpush2.msra.mxu0 0.0
        %418 = vmatprep.subr.mxu0 0.0
        %419 = vmatpush2.msra.mxu0 0.0
        %420 = vmatprep.subr.mxu0 0.0
        %421 = vmatpush2.msra.mxu0 0.0
        %422 = vmatprep.mubr.f32.mxu0 0.0
        %423 = vmatmul.mubr.f32.gmra.mxu0 %v285
        %v424 = vpop.f32.mrf.mxu0
        %v425 = vadd.f32 0.0, %v424
        %v426 = vpop.f32.mrf.mxu0
        %v427 = vadd.f32 0.0, %v426
        %428 = vdwg.mxu0
        %v430 = vsel %vm283, %v216, 0
        %432 = vmatprep.subr.mxu0 0.0
        %433 = vmatpush1.msra.mxu0 0.0
        %434 = vmatprep.subr.mxu0 0.0
        %435 = vmatpush1.msra.mxu0 0.0
        %436 = vmatprep.subr.mxu0 0.0
        %437 = vmatpush1.msra.mxu0 0.0
        %438 = vmatprep.subr.mxu0 0.0
        %439 = vmatpush1.msra.mxu0 0.0
        %440 = vmatprep.subr.mxu0 0.0
        %441 = vmatpush1.msra.mxu0 0.0
        %442 = vmatprep.subr.mxu0 0.0
        %443 = vmatpush1.msra.mxu0 0.0
        %444 = vmatprep.subr.mxu0 0.0
        %445 = vmatpush1.msra.mxu0 0.0
        %446 = vmatprep.subr.mxu0 0.0
        %447 = vmatpush1.msra.mxu0 0.0
        %448 = vmatprep.subr.mxu0 %v247
        %449 = vmatpush1.msra.mxu0 %v246
        %450 = vmatprep.subr.mxu0 %v243
        %451 = vmatpush1.msra.mxu0 %v242
        %452 = vmatprep.subr.mxu0 %v239
        %453 = vmatpush1.msra.mxu0 %v238
        %454 = vmatprep.subr.mxu0 %v235
        %455 = vmatpush1.msra.mxu0 %v234
        %456 = vmatprep.subr.mxu0 %v231
        %457 = vmatpush1.msra.mxu0 %v230
        %458 = vmatprep.subr.mxu0 %v227
        %459 = vmatpush1.msra.mxu0 %v226
        %460 = vmatprep.subr.mxu0 %v223
        %461 = vmatpush1.msra.mxu0 %v222
        %462 = vmatprep.subr.mxu0 %v219
        %463 = vmatpush1.msra.mxu0 %v218
        %464 = vmatprep.subr.mxu0 0.0
        %465 = vmatpush2.msra.mxu0 0.0
        %466 = vmatprep.subr.mxu0 0.0
        %467 = vmatpush2.msra.mxu0 0.0
        %468 = vmatprep.subr.mxu0 0.0
        %469 = vmatpush2.msra.mxu0 0.0
        %470 = vmatprep.subr.mxu0 0.0
        %471 = vmatpush2.msra.mxu0 0.0
        %472 = vmatprep.subr.mxu0 0.0
        %473 = vmatpush2.msra.mxu0 0.0
        %474 = vmatprep.subr.mxu0 0.0
        %475 = vmatpush2.msra.mxu0 0.0
        %476 = vmatprep.subr.mxu0 0.0
        %477 = vmatpush2.msra.mxu0 0.0
        %478 = vmatprep.subr.mxu0 0.0
        %479 = vmatpush2.msra.mxu0 0.0
        %480 = vmatprep.subr.mxu0 0.0
        %481 = vmatpush2.msra.mxu0 0.0
        %482 = vmatprep.subr.mxu0 0.0
        %483 = vmatpush2.msra.mxu0 0.0
        %484 = vmatprep.subr.mxu0 0.0
        %485 = vmatpush2.msra.mxu0 0.0
        %486 = vmatprep.subr.mxu0 0.0
        %487 = vmatpush2.msra.mxu0 0.0
        %488 = vmatprep.subr.mxu0 0.0
        %489 = vmatpush2.msra.mxu0 0.0
        %490 = vmatprep.subr.mxu0 0.0
        %491 = vmatpush2.msra.mxu0 0.0
        %492 = vmatprep.subr.mxu0 0.0
        %493 = vmatpush2.msra.mxu0 0.0
        %494 = vmatprep.subr.mxu0 0.0
        %495 = vmatpush2.msra.mxu0 0.0
        %496 = vmatprep.mubr.f32.mxu0 0.0
        %497 = vmatmul.mubr.f32.gmra.mxu0 %v430
        %v498 = vpop.f32.mrf.mxu0
        %v499 = vadd.f32 %v354, %v498
        %v500 = vpop.f32.mrf.mxu0
        %v501 = vadd.f32 %v356, %v500
        %502 = vdwg.mxu0
        %503 = vmatprep.subr.mxu0 0.0
        %504 = vmatpush1.msra.mxu0 0.0
        %505 = vmatprep.subr.mxu0 0.0
        %506 = vmatpush1.msra.mxu0 0.0
        %507 = vmatprep.subr.mxu0 0.0
        %508 = vmatpush1.msra.mxu0 0.0
        %509 = vmatprep.subr.mxu0 0.0
        %510 = vmatpush1.msra.mxu0 0.0
        %511 = vmatprep.subr.mxu0 0.0
        %512 = vmatpush1.msra.mxu0 0.0
        %513 = vmatprep.subr.mxu0 0.0
        %514 = vmatpush1.msra.mxu0 0.0
        %515 = vmatprep.subr.mxu0 0.0
        %516 = vmatpush1.msra.mxu0 0.0
        %517 = vmatprep.subr.mxu0 0.0
        %518 = vmatpush1.msra.mxu0 0.0
        %519 = vmatprep.subr.mxu0 %v249
        %520 = vmatpush1.msra.mxu0 %v248
        %521 = vmatprep.subr.mxu0 %v245
        %522 = vmatpush1.msra.mxu0 %v244
        %523 = vmatprep.subr.mxu0 %v241
        %524 = vmatpush1.msra.mxu0 %v240
        %525 = vmatprep.subr.mxu0 %v237
        %526 = vmatpush1.msra.mxu0 %v236
        %527 = vmatprep.subr.mxu0 %v233
        %528 = vmatpush1.msra.mxu0 %v232
        %529 = vmatprep.subr.mxu0 %v229
        %530 = vmatpush1.msra.mxu0 %v228
        %531 = vmatprep.subr.mxu0 %v225
        %532 = vmatpush1.msra.mxu0 %v224
        %533 = vmatprep.subr.mxu0 %v221
        %534 = vmatpush1.msra.mxu0 %v220
        %535 = vmatprep.subr.mxu0 0.0
        %536 = vmatpush2.msra.mxu0 0.0
        %537 = vmatprep.subr.mxu0 0.0
        %538 = vmatpush2.msra.mxu0 0.0
        %539 = vmatprep.subr.mxu0 0.0
        %540 = vmatpush2.msra.mxu0 0.0
        %541 = vmatprep.subr.mxu0 0.0
        %542 = vmatpush2.msra.mxu0 0.0
        %543 = vmatprep.subr.mxu0 0.0
        %544 = vmatpush2.msra.mxu0 0.0
        %545 = vmatprep.subr.mxu0 0.0
        %546 = vmatpush2.msra.mxu0 0.0
        %547 = vmatprep.subr.mxu0 0.0
        %548 = vmatpush2.msra.mxu0 0.0
        %549 = vmatprep.subr.mxu0 0.0
        %550 = vmatpush2.msra.mxu0 0.0
        %551 = vmatprep.subr.mxu0 0.0
        %552 = vmatpush2.msra.mxu0 0.0
        %553 = vmatprep.subr.mxu0 0.0
        %554 = vmatpush2.msra.mxu0 0.0
        %555 = vmatprep.subr.mxu0 0.0
        %556 = vmatpush2.msra.mxu0 0.0
        %557 = vmatprep.subr.mxu0 0.0
        %558 = vmatpush2.msra.mxu0 0.0
        %559 = vmatprep.subr.mxu0 0.0
        %560 = vmatpush2.msra.mxu0 0.0
        %561 = vmatprep.subr.mxu0 0.0
        %562 = vmatpush2.msra.mxu0 0.0
        %563 = vmatprep.subr.mxu0 0.0
        %564 = vmatpush2.msra.mxu0 0.0
        %565 = vmatprep.subr.mxu0 0.0
        %566 = vmatpush2.msra.mxu0 0.0
        %567 = vmatprep.mubr.f32.mxu0 0.0
        %568 = vmatmul.mubr.f32.gmra.mxu0 %v430
        %v569 = vpop.f32.mrf.mxu0
        %v570 = vadd.f32 %v425, %v569
        %v571 = vpop.f32.mrf.mxu0
        %v572 = vadd.f32 %v427, %v571
        %573 = vdwg.mxu0
        %v574 = vld [vmem:[%s215] sm:$0xff]
        %v575 = vld [vmem:[%s215 + $0x8] sm:$0xff]
        %v576 = vld [vmem:[%s215 + $0x10] sm:$0xff]
        %v577 = vld [vmem:[%s215 + $0x18] sm:$0xff]
        %v578 = vmul.f32 %v574, 1.442695
        %v579 = vpow.pop %v578
        %v580 = vmul.f32 %v575, 3.1415927
        %v581 = vmul.f32 %v576, 1.442695
        %v582 = vpow.pop %v581
        %v583 = vmul.f32 %v577, 3.1415927
        %v584 = vand.u32 2147483647, %v580
        %vm585 = vcmp.le.f32.partialorder %v584, 0.7853982
        %vm586 = vcmp.lt.s32.totalorder %v580, 0
        %v587 = vand.u32 %v580, 2139095040
        %v588 = vshrl.u32 %v587, 23
        %v589 = vsub.s32 %v588, 127
        %v590 = vand.u32 2147483647, %v580
        %v591 = vand.u32 %v590, 8388607
        %v592 = vor.u32 %v591, 8388608
        %v593 = vsub.s32 0, %v592
        %v594 = vadd.s32 %v589, 1
        %vm595 = vcmp.gt.s32.totalorder %v594, 0
        %v596 = vsel %vm595, %v594, 0
        %v597 = vshrl.u32 %v596, 5
        %v598 = vand.u32 %v596, 31
        %v599 = vsub.s32 32, %v598
        %v600 = vshrl.u32 683565275, %v599
        %v601 = vshll.u32 683565275, %v598
        %v602 = vshrl.u32 2475754826, %v599
        %v603 = vor.u32 %v601, %v602
        %v604 = vshll.u32 2475754826, %v598
        %v605 = vshrl.u32 2131351028, %v599
        %v606 = vor.u32 %v604, %v605
        %v607 = vshll.u32 2131351028, %v598
        %v608 = vshrl.u32 2102212464, %v599
        %v609 = vor.u32 %v607, %v608
        %v610 = vshll.u32 2102212464, %v598
        %v611 = vshrl.u32 920167782, %v599
        %v612 = vor.u32 %v610, %v611
        %v613 = vshll.u32 920167782, %v598
        %v614 = vshrl.u32 1326507024, %v599
        %v615 = vor.u32 %v613, %v614
        %vm616 = vcmp.lt.s32.totalorder %v597, 1
        %vm617 = vcmp.lt.s32.totalorder %v597, 2
        %vm618 = vcmp.lt.s32.totalorder %v597, 3
        %vm619 = vcmp.lt.s32.totalorder %v597, 4
        %v620 = vsel %vm616, %v600, %v603
        %v621 = vsel %vm619, %v609, 2102212464
        %v622 = vsel %vm618, %v606, %v621
        %v623 = vsel %vm617, %v620, %v622
        %v624 = vsel %vm616, %v603, %v606
        %v625 = vsel %vm619, %v612, 920167782
        %v626 = vsel %vm618, %v609, %v625
        %v627 = vsel %vm617, %v624, %v626
        %v628 = vsel %vm616, %v606, %v609
        %v629 = vsel %vm619, %v615, 1326507024
        %v630 = vsel %vm618, %v612, %v629
        %v631 = vsel %vm617, %v628, %v630
        %v632 = vshll.u32 %v592, 8
        %v633 = vmul.u32.u64.compose %v632, %v631
        %v634 = vextract.low.u32 %v633
        %v635 = vextract.high.u32 %v633
        %v636 = vmul.u32.u64.compose %v632, %v627
        %v637 = vextract.low.u32 %v636
        %v638 = vextract.high.u32 %v636
        %v639 = vmul.u32 %v632, %v623
        %v640 = vadd.s32 %v635, %v637
        %vm641 = vc.u32 %v635, %v637
        %v642 = vadd.s32 %v638, 1
        %v643 = vsel %vm641, %v642, %v638
        %v644 = vadd.s32 %v639, %v643
        %v645 = vadd.s32 %v644, 536870912
        %v646 = vshrl.u32 %v645, 30
        %v647 = vshll.u32 %v646, 30
        %v648 = vsub.s32 %v644, %v647
        %vm649 = vcmp.lt.s32.totalorder %v648, 0
        %v650 = vsub.s32 0, %v648
        %v651 = vsel %vm649, %v650, %v648
        %v652 = vclz %v651
        %v653 = vsub.s32 %v652, 2
        %vm654 = vcmp.gt.s32.totalorder 0, %v653
        %v655 = vsel %vm654, 0, %v653
        %v656 = vsub.s32 32, %v655
        %v657 = vshll.u32 %v648, %v655
        %v658 = vshrl.u32 %v640, %v656
        %v659 = vor.u32 %v657, %v658
        %v660 = vsub.s32 4294967266, %v655
        %v661 = vadd.s32 %v660, 127
        %v662 = vshll.u32 %v661, 23
        %v663 = vor.u32 4788187, %v662
        %v664 = vand.u32 2147483647, %v663
        %v666 = vcvt.s32.f32 %v659
        %v667 = vmul.f32 %v666, %v664
        %v668 = vxor.u32 %v667, 2147483648
        %v669 = vsel %vm586, %v668, %v667
        %v670 = vsub.s32 4, %v646
        %v671 = vsel %vm586, %v670, %v646
        %v672 = vsel %vm585, %v580, %v669
        %v673 = vsel %vm585, 0, %v671
        %v674 = vcosq.f32.pop %v672
        %v675 = vsinq.f32.pop %v672
        %vm676 = vweird.f32 %v580
        %v677 = vand.u32 %v673, 3
        %vm678 = vcmp.lt.s32.totalorder %v677, 2
        %vm679 = vcmp.eq.s32.totalorder %v677, 0
        %v680 = vxor.u32 %v675, 2147483648
        %v681 = vsel %vm679, %v674, %v680
        %vm682 = vcmp.eq.s32.totalorder %v677, 2
        %v683 = vxor.u32 %v674, 2147483648
        %v684 = vsel %vm682, %v683, %v675
        %v685 = vsel %vm678, %v681, %v684
        %v686 = vsel %vm676, nan, %v685
        %v687 = vmul.f32 %v579, %v686
        %v688 = vand.u32 2147483647, %v580
        %vm689 = vcmp.le.f32.partialorder %v688, 0.7853982
        %vm690 = vcmp.lt.s32.totalorder %v580, 0
        %v691 = vand.u32 %v580, 2139095040
        %v692 = vshrl.u32 %v691, 23
        %v693 = vsub.s32 %v692, 127
        %v694 = vand.u32 2147483647, %v580
        %v695 = vand.u32 %v694, 8388607
        %v696 = vor.u32 %v695, 8388608
        %v697 = vsub.s32 0, %v696
        %v698 = vadd.s32 %v693, 1
        %vm699 = vcmp.gt.s32.totalorder %v698, 0
        %v700 = vsel %vm699, %v698, 0
        %v701 = vshrl.u32 %v700, 5
        %v702 = vand.u32 %v700, 31
        %v703 = vsub.s32 32, %v702
        %v704 = vshrl.u32 683565275, %v703
        %v705 = vshll.u32 683565275, %v702
        %v706 = vshrl.u32 2475754826, %v703
        %v707 = vor.u32 %v705, %v706
        %v708 = vshll.u32 2475754826, %v702
        %v709 = vshrl.u32 2131351028, %v703
        %v710 = vor.u32 %v708, %v709
        %v711 = vshll.u32 2131351028, %v702
        %v712 = vshrl.u32 2102212464, %v703
        %v713 = vor.u32 %v711, %v712
        %v714 = vshll.u32 2102212464, %v702
        %v715 = vshrl.u32 920167782, %v703
        %v716 = vor.u32 %v714, %v715
        %v717 = vshll.u32 920167782, %v702
        %v718 = vshrl.u32 1326507024, %v703
        %v719 = vor.u32 %v717, %v718
        %vm720 = vcmp.lt.s32.totalorder %v701, 1
        %vm721 = vcmp.lt.s32.totalorder %v701, 2
        %vm722 = vcmp.lt.s32.totalorder %v701, 3
        %vm723 = vcmp.lt.s32.totalorder %v701, 4
        %v724 = vsel %vm720, %v704, %v707
        %v725 = vsel %vm723, %v713, 2102212464
        %v726 = vsel %vm722, %v710, %v725
        %v727 = vsel %vm721, %v724, %v726
        %v728 = vsel %vm720, %v707, %v710
        %v729 = vsel %vm723, %v716, 920167782
        %v730 = vsel %vm722, %v713, %v729
        %v731 = vsel %vm721, %v728, %v730
        %v732 = vsel %vm720, %v710, %v713
        %v733 = vsel %vm723, %v719, 1326507024
        %v734 = vsel %vm722, %v716, %v733
        %v735 = vsel %vm721, %v732, %v734
        %v736 = vshll.u32 %v696, 8
        %v737 = vmul.u32.u64.compose %v736, %v735
        %v738 = vextract.low.u32 %v737
        %v739 = vextract.high.u32 %v737
        %v740 = vmul.u32.u64.compose %v736, %v731
        %v741 = vextract.low.u32 %v740
        %v742 = vextract.high.u32 %v740
        %v743 = vmul.u32 %v736, %v727
        %v744 = vadd.s32 %v739, %v741
        %vm745 = vc.u32 %v739, %v741
        %v746 = vadd.s32 %v742, 1
        %v747 = vsel %vm745, %v746, %v742
        %v748 = vadd.s32 %v743, %v747
        %v749 = vadd.s32 %v748, 536870912
        %v750 = vshrl.u32 %v749, 30
        %v751 = vshll.u32 %v750, 30
        %v752 = vsub.s32 %v748, %v751
        %vm753 = vcmp.lt.s32.totalorder %v752, 0
        %v754 = vsub.s32 0, %v752
        %v755 = vsel %vm753, %v754, %v752
        %v756 = vclz %v755
        %v757 = vsub.s32 %v756, 2
        %vm758 = vcmp.gt.s32.totalorder 0, %v757
        %v759 = vsel %vm758, 0, %v757
        %v760 = vsub.s32 32, %v759
        %v761 = vshll.u32 %v752, %v759
        %v762 = vshrl.u32 %v744, %v760
        %v763 = vor.u32 %v761, %v762
        %v764 = vsub.s32 4294967266, %v759
        %v765 = vadd.s32 %v764, 127
        %v766 = vshll.u32 %v765, 23
        %v767 = vor.u32 4788187, %v766
        %v768 = vand.u32 2147483647, %v767
        %v770 = vcvt.s32.f32 %v763
        %v771 = vmul.f32 %v770, %v768
        %v772 = vxor.u32 %v771, 2147483648
        %v773 = vsel %vm690, %v772, %v771
        %v774 = vsub.s32 4, %v750
        %v775 = vsel %vm690, %v774, %v750
        %v776 = vsel %vm689, %v580, %v773
        %v777 = vsel %vm689, 0, %v775
        %v778 = vcosq.f32.pop %v776
        %v779 = vsinq.f32.pop %v776
        %vm780 = vweird.f32 %v580
        %v781 = vadd.s32 %v777, 3
        %v782 = vand.u32 %v781, 3
        %vm783 = vcmp.lt.s32.totalorder %v782, 2
        %vm784 = vcmp.eq.s32.totalorder %v782, 0
        %v785 = vxor.u32 %v779, 2147483648
        %v786 = vsel %vm784, %v778, %v785
        %vm787 = vcmp.eq.s32.totalorder %v782, 2
        %v788 = vxor.u32 %v778, 2147483648
        %v789 = vsel %vm787, %v788, %v779
        %v790 = vsel %vm783, %v786, %v789
        %v791 = vsel %vm780, nan, %v790
        %v792 = vmul.f32 %v579, %v791
        %v793 = vand.u32 2147483647, %v583
        %vm794 = vcmp.le.f32.partialorder %v793, 0.7853982
        %vm795 = vcmp.lt.s32.totalorder %v583, 0
        %v796 = vand.u32 %v583, 2139095040
        %v797 = vshrl.u32 %v796, 23
        %v798 = vsub.s32 %v797, 127
        %v799 = vand.u32 2147483647, %v583
        %v800 = vand.u32 %v799, 8388607
        %v801 = vor.u32 %v800, 8388608
        %v802 = vsub.s32 0, %v801
        %v803 = vadd.s32 %v798, 1
        %vm804 = vcmp.gt.s32.totalorder %v803, 0
        %v805 = vsel %vm804, %v803, 0
        %v806 = vshrl.u32 %v805, 5
        %v807 = vand.u32 %v805, 31
        %v808 = vsub.s32 32, %v807
        %v809 = vshrl.u32 683565275, %v808
        %v810 = vshll.u32 683565275, %v807
        %v811 = vshrl.u32 2475754826, %v808
        %v812 = vor.u32 %v810, %v811
        %v813 = vshll.u32 2475754826, %v807
        %v814 = vshrl.u32 2131351028, %v808
        %v815 = vor.u32 %v813, %v814
        %v816 = vshll.u32 2131351028, %v807
        %v817 = vshrl.u32 2102212464, %v808
        %v818 = vor.u32 %v816, %v817
        %v819 = vshll.u32 2102212464, %v807
        %v820 = vshrl.u32 920167782, %v808
        %v821 = vor.u32 %v819, %v820
        %v822 = vshll.u32 920167782, %v807
        %v823 = vshrl.u32 1326507024, %v808
        %v824 = vor.u32 %v822, %v823
        %vm825 = vcmp.lt.s32.totalorder %v806, 1
        %vm826 = vcmp.lt.s32.totalorder %v806, 2
        %vm827 = vcmp.lt.s32.totalorder %v806, 3
        %vm828 = vcmp.lt.s32.totalorder %v806, 4
        %v829 = vsel %vm825, %v809, %v812
        %v830 = vsel %vm828, %v818, 2102212464
        %v831 = vsel %vm827, %v815, %v830
        %v832 = vsel %vm826, %v829, %v831
        %v833 = vsel %vm825, %v812, %v815
        %v834 = vsel %vm828, %v821, 920167782
        %v835 = vsel %vm827, %v818, %v834
        %v836 = vsel %vm826, %v833, %v835
        %v837 = vsel %vm825, %v815, %v818
        %v838 = vsel %vm828, %v824, 1326507024
        %v839 = vsel %vm827, %v821, %v838
        %v840 = vsel %vm826, %v837, %v839
        %v841 = vshll.u32 %v801, 8
        %v842 = vmul.u32.u64.compose %v841, %v840
        %v843 = vextract.low.u32 %v842
        %v844 = vextract.high.u32 %v842
        %v845 = vmul.u32.u64.compose %v841, %v836
        %v846 = vextract.low.u32 %v845
        %v847 = vextract.high.u32 %v845
        %v848 = vmul.u32 %v841, %v832
        %v849 = vadd.s32 %v844, %v846
        %vm850 = vc.u32 %v844, %v846
        %v851 = vadd.s32 %v847, 1
        %v852 = vsel %vm850, %v851, %v847
        %v853 = vadd.s32 %v848, %v852
        %v854 = vadd.s32 %v853, 536870912
        %v855 = vshrl.u32 %v854, 30
        %v856 = vshll.u32 %v855, 30
        %v857 = vsub.s32 %v853, %v856
        %vm858 = vcmp.lt.s32.totalorder %v857, 0
        %v859 = vsub.s32 0, %v857
        %v860 = vsel %vm858, %v859, %v857
        %v861 = vclz %v860
        %v862 = vsub.s32 %v861, 2
        %vm863 = vcmp.gt.s32.totalorder 0, %v862
        %v864 = vsel %vm863, 0, %v862
        %v865 = vsub.s32 32, %v864
        %v866 = vshll.u32 %v857, %v864
        %v867 = vshrl.u32 %v849, %v865
        %v868 = vor.u32 %v866, %v867
        %v869 = vsub.s32 4294967266, %v864
        %v870 = vadd.s32 %v869, 127
        %v871 = vshll.u32 %v870, 23
        %v872 = vor.u32 4788187, %v871
        %v873 = vand.u32 2147483647, %v872
        %v875 = vcvt.s32.f32 %v868
        %v876 = vmul.f32 %v875, %v873
        %v877 = vxor.u32 %v876, 2147483648
        %v878 = vsel %vm795, %v877, %v876
        %v879 = vsub.s32 4, %v855
        %v880 = vsel %vm795, %v879, %v855
        %v881 = vsel %vm794, %v583, %v878
        %v882 = vsel %vm794, 0, %v880
        %v883 = vcosq.f32.pop %v881
        %v884 = vsinq.f32.pop %v881
        %vm885 = vweird.f32 %v583
        %v886 = vand.u32 %v882, 3
        %vm887 = vcmp.lt.s32.totalorder %v886, 2
        %vm888 = vcmp.eq.s32.totalorder %v886, 0
        %v889 = vxor.u32 %v884, 2147483648
        %v890 = vsel %vm888, %v883, %v889
        %vm891 = vcmp.eq.s32.totalorder %v886, 2
        %v892 = vxor.u32 %v883, 2147483648
        %v893 = vsel %vm891, %v892, %v884
        %v894 = vsel %vm887, %v890, %v893
        %v895 = vsel %vm885, nan, %v894
        %v896 = vmul.f32 %v582, %v895
        %v897 = vand.u32 2147483647, %v583
        %vm898 = vcmp.le.f32.partialorder %v897, 0.7853982
        %vm899 = vcmp.lt.s32.totalorder %v583, 0
        %v900 = vand.u32 %v583, 2139095040
        %v901 = vshrl.u32 %v900, 23
        %v902 = vsub.s32 %v901, 127
        %v903 = vand.u32 2147483647, %v583
        %v904 = vand.u32 %v903, 8388607
        %v905 = vor.u32 %v904, 8388608
        %v906 = vsub.s32 0, %v905
        %v907 = vadd.s32 %v902, 1
        %vm908 = vcmp.gt.s32.totalorder %v907, 0
        %v909 = vsel %vm908, %v907, 0
        %v910 = vshrl.u32 %v909, 5
        %v911 = vand.u32 %v909, 31
        %v912 = vsub.s32 32, %v911
        %v913 = vshrl.u32 683565275, %v912
        %v914 = vshll.u32 683565275, %v911
        %v915 = vshrl.u32 2475754826, %v912
        %v916 = vor.u32 %v914, %v915
        %v917 = vshll.u32 2475754826, %v911
        %v918 = vshrl.u32 2131351028, %v912
        %v919 = vor.u32 %v917, %v918
        %v920 = vshll.u32 2131351028, %v911
        %v921 = vshrl.u32 2102212464, %v912
        %v922 = vor.u32 %v920, %v921
        %v923 = vshll.u32 2102212464, %v911
        %v924 = vshrl.u32 920167782, %v912
        %v925 = vor.u32 %v923, %v924
        %v926 = vshll.u32 920167782, %v911
        %v927 = vshrl.u32 1326507024, %v912
        %v928 = vor.u32 %v926, %v927
        %vm929 = vcmp.lt.s32.totalorder %v910, 1
        %vm930 = vcmp.lt.s32.totalorder %v910, 2
        %vm931 = vcmp.lt.s32.totalorder %v910, 3
        %vm932 = vcmp.lt.s32.totalorder %v910, 4
        %v933 = vsel %vm929, %v913, %v916
        %v934 = vsel %vm932, %v922, 2102212464
        %v935 = vsel %vm931, %v919, %v934
        %v936 = vsel %vm930, %v933, %v935
        %v937 = vsel %vm929, %v916, %v919
        %v938 = vsel %vm932, %v925, 920167782
        %v939 = vsel %vm931, %v922, %v938
        %v940 = vsel %vm930, %v937, %v939
        %v941 = vsel %vm929, %v919, %v922
        %v942 = vsel %vm932, %v928, 1326507024
        %v943 = vsel %vm931, %v925, %v942
        %v944 = vsel %vm930, %v941, %v943
        %v945 = vshll.u32 %v905, 8
        %v946 = vmul.u32.u64.compose %v945, %v944
        %v947 = vextract.low.u32 %v946
        %v948 = vextract.high.u32 %v946
        %v949 = vmul.u32.u64.compose %v945, %v940
        %v950 = vextract.low.u32 %v949
        %v951 = vextract.high.u32 %v949
        %v952 = vmul.u32 %v945, %v936
        %v953 = vadd.s32 %v948, %v950
        %vm954 = vc.u32 %v948, %v950
        %v955 = vadd.s32 %v951, 1
        %v956 = vsel %vm954, %v955, %v951
        %v957 = vadd.s32 %v952, %v956
        %v958 = vadd.s32 %v957, 536870912
        %v959 = vshrl.u32 %v958, 30
        %v960 = vshll.u32 %v959, 30
        %v961 = vsub.s32 %v957, %v960
        %vm962 = vcmp.lt.s32.totalorder %v961, 0
        %v963 = vsub.s32 0, %v961
        %v964 = vsel %vm962, %v963, %v961
        %v965 = vclz %v964
        %v966 = vsub.s32 %v965, 2
        %vm967 = vcmp.gt.s32.totalorder 0, %v966
        %v968 = vsel %vm967, 0, %v966
        %v969 = vsub.s32 32, %v968
        %v970 = vshll.u32 %v961, %v968
        %v971 = vshrl.u32 %v953, %v969
        %v972 = vor.u32 %v970, %v971
        %v973 = vsub.s32 4294967266, %v968
        %v974 = vadd.s32 %v973, 127
        %v975 = vshll.u32 %v974, 23
        %v976 = vor.u32 4788187, %v975
        %v977 = vand.u32 2147483647, %v976
        %v979 = vcvt.s32.f32 %v972
        %v980 = vmul.f32 %v979, %v977
        %v981 = vxor.u32 %v980, 2147483648
        %v982 = vsel %vm899, %v981, %v980
        %v983 = vsub.s32 4, %v959
        %v984 = vsel %vm899, %v983, %v959
        %v985 = vsel %vm898, %v583, %v982
        %v986 = vsel %vm898, 0, %v984
        %v987 = vcosq.f32.pop %v985
        %v988 = vsinq.f32.pop %v985
        %vm989 = vweird.f32 %v583
        %v990 = vadd.s32 %v986, 3
        %v991 = vand.u32 %v990, 3
        %vm992 = vcmp.lt.s32.totalorder %v991, 2
        %vm993 = vcmp.eq.s32.totalorder %v991, 0
        %v994 = vxor.u32 %v988, 2147483648
        %v995 = vsel %vm993, %v987, %v994
        %vm996 = vcmp.eq.s32.totalorder %v991, 2
        %v997 = vxor.u32 %v987, 2147483648
        %v998 = vsel %vm996, %v997, %v988
        %v999 = vsel %vm992, %v995, %v998
        %v1000 = vsel %vm989, nan, %v999
        %v1001 = vmul.f32 %v582, %v1000
        %v1002 = vmul.f32 %v499, %v687
        %v1003 = vmul.f32 %v501, %v792
        %v1004 = vsub.f32 %v1002, %v1003
        %v1005 = vmul.f32 %v570, %v896
        %v1006 = vadd.f32 %v1004, %v1005
        %v1007 = vmul.f32 %v572, %v1001
        %v1008 = vsub.f32 %v1006, %v1007
        %v1009 = vmul.f32 %v499, %v792
        %v1010 = vmul.f32 %v501, %v687
        %v1011 = vadd.f32 %v1009, %v1010
        %v1012 = vmul.f32 %v570, %v1001
        %v1013 = vadd.f32 %v1011, %v1012
        %v1014 = vmul.f32 %v572, %v896
        %v1015 = vadd.f32 %v1013, %v1014
        %v1016 = vld [vmem:[%s210 + $0x2] sm:$0xff]
        %v1018 = vsel %vm283, %v1016, 0
        %1020 = vmatprep.subr.mxu0 0.0
        %1021 = vmatpush1.msra.mxu0 0.0
        %1022 = vmatprep.subr.mxu0 0.0
        %1023 = vmatpush1.msra.mxu0 0.0
        %1024 = vmatprep.subr.mxu0 0.0
        %1025 = vmatpush1.msra.mxu0 0.0
        %1026 = vmatprep.subr.mxu0 0.0
        %1027 = vmatpush1.msra.mxu0 0.0
        %1028 = vmatprep.subr.mxu0 0.0
        %1029 = vmatpush1.msra.mxu0 0.0
        %1030 = vmatprep.subr.mxu0 0.0
        %1031 = vmatpush1.msra.mxu0 0.0
        %1032 = vmatprep.subr.mxu0 0.0
        %1033 = vmatpush1.msra.mxu0 0.0
        %1034 = vmatprep.subr.mxu0 0.0
        %1035 = vmatpush1.msra.mxu0 0.0
        %1036 = vmatprep.subr.mxu0 %v280
        %1037 = vmatpush1.msra.mxu0 %v279
        %1038 = vmatprep.subr.mxu0 %v276
        %1039 = vmatpush1.msra.mxu0 %v275
        %1040 = vmatprep.subr.mxu0 %v272
        %1041 = vmatpush1.msra.mxu0 %v271
        %1042 = vmatprep.subr.mxu0 %v268
        %1043 = vmatpush1.msra.mxu0 %v267
        %1044 = vmatprep.subr.mxu0 %v264
        %1045 = vmatpush1.msra.mxu0 %v263
        %1046 = vmatprep.subr.mxu0 %v260
        %1047 = vmatpush1.msra.mxu0 %v259
        %1048 = vmatprep.subr.mxu0 %v256
        %1049 = vmatpush1.msra.mxu0 %v255
        %1050 = vmatprep.subr.mxu0 %v252
        %1051 = vmatpush1.msra.mxu0 %v251
        %1052 = vmatprep.subr.mxu0 0.0
        %1053 = vmatpush2.msra.mxu0 0.0
        %1054 = vmatprep.subr.mxu0 0.0
        %1055 = vmatpush2.msra.mxu0 0.0
        %1056 = vmatprep.subr.mxu0 0.0
        %1057 = vmatpush2.msra.mxu0 0.0
        %1058 = vmatprep.subr.mxu0 0.0
        %1059 = vmatpush2.msra.mxu0 0.0
        %1060 = vmatprep.subr.mxu0 0.0
        %1061 = vmatpush2.msra.mxu0 0.0
        %1062 = vmatprep.subr.mxu0 0.0
        %1063 = vmatpush2.msra.mxu0 0.0
        %1064 = vmatprep.subr.mxu0 0.0
        %1065 = vmatpush2.msra.mxu0 0.0
        %1066 = vmatprep.subr.mxu0 0.0
        %1067 = vmatpush2.msra.mxu0 0.0
        %1068 = vmatprep.subr.mxu0 0.0
        %1069 = vmatpush2.msra.mxu0 0.0
        %1070 = vmatprep.subr.mxu0 0.0
        %1071 = vmatpush2.msra.mxu0 0.0
        %1072 = vmatprep.subr.mxu0 0.0
        %1073 = vmatpush2.msra.mxu0 0.0
        %1074 = vmatprep.subr.mxu0 0.0
        %1075 = vmatpush2.msra.mxu0 0.0
        %1076 = vmatprep.subr.mxu0 0.0
        %1077 = vmatpush2.msra.mxu0 0.0
        %1078 = vmatprep.subr.mxu0 0.0
        %1079 = vmatpush2.msra.mxu0 0.0
        %1080 = vmatprep.subr.mxu0 0.0
        %1081 = vmatpush2.msra.mxu0 0.0
        %1082 = vmatprep.subr.mxu0 0.0
        %1083 = vmatpush2.msra.mxu0 0.0
        %1084 = vmatprep.mubr.f32.mxu0 0.0
        %1085 = vmatmul.mubr.f32.gmra.mxu0 %v1018
        %v1086 = vpop.f32.mrf.mxu0
        %v1087 = vadd.f32 0.0, %v1086
        %v1088 = vpop.f32.mrf.mxu0
        %v1089 = vadd.f32 0.0, %v1088
        %1090 = vdwg.mxu0
        %1091 = vmatprep.subr.mxu0 0.0
        %1092 = vmatpush1.msra.mxu0 0.0
        %1093 = vmatprep.subr.mxu0 0.0
        %1094 = vmatpush1.msra.mxu0 0.0
        %1095 = vmatprep.subr.mxu0 0.0
        %1096 = vmatpush1.msra.mxu0 0.0
        %1097 = vmatprep.subr.mxu0 0.0
        %1098 = vmatpush1.msra.mxu0 0.0
        %1099 = vmatprep.subr.mxu0 0.0
        %1100 = vmatpush1.msra.mxu0 0.0
        %1101 = vmatprep.subr.mxu0 0.0
        %1102 = vmatpush1.msra.mxu0 0.0
        %1103 = vmatprep.subr.mxu0 0.0
        %1104 = vmatpush1.msra.mxu0 0.0
        %1105 = vmatprep.subr.mxu0 0.0
        %1106 = vmatpush1.msra.mxu0 0.0
        %1107 = vmatprep.subr.mxu0 %v282
        %1108 = vmatpush1.msra.mxu0 %v281
        %1109 = vmatprep.subr.mxu0 %v278
        %1110 = vmatpush1.msra.mxu0 %v277
        %1111 = vmatprep.subr.mxu0 %v274
        %1112 = vmatpush1.msra.mxu0 %v273
        %1113 = vmatprep.subr.mxu0 %v270
        %1114 = vmatpush1.msra.mxu0 %v269
        %1115 = vmatprep.subr.mxu0 %v266
        %1116 = vmatpush1.msra.mxu0 %v265
        %1117 = vmatprep.subr.mxu0 %v262
        %1118 = vmatpush1.msra.mxu0 %v261
        %1119 = vmatprep.subr.mxu0 %v258
        %1120 = vmatpush1.msra.mxu0 %v257
        %1121 = vmatprep.subr.mxu0 %v254
        %1122 = vmatpush1.msra.mxu0 %v253
        %1123 = vmatprep.subr.mxu0 0.0
        %1124 = vmatpush2.msra.mxu0 0.0
        %1125 = vmatprep.subr.mxu0 0.0
        %1126 = vmatpush2.msra.mxu0 0.0
        %1127 = vmatprep.subr.mxu0 0.0
        %1128 = vmatpush2.msra.mxu0 0.0
        %1129 = vmatprep.subr.mxu0 0.0
        %1130 = vmatpush2.msra.mxu0 0.0
        %1131 = vmatprep.subr.mxu0 0.0
        %1132 = vmatpush2.msra.mxu0 0.0
        %1133 = vmatprep.subr.mxu0 0.0
        %1134 = vmatpush2.msra.mxu0 0.0
        %1135 = vmatprep.subr.mxu0 0.0
        %1136 = vmatpush2.msra.mxu0 0.0
        %1137 = vmatprep.subr.mxu0 0.0
        %1138 = vmatpush2.msra.mxu0 0.0
        %1139 = vmatprep.subr.mxu0 0.0
        %1140 = vmatpush2.msra.mxu0 0.0
        %1141 = vmatprep.subr.mxu0 0.0
        %1142 = vmatpush2.msra.mxu0 0.0
        %1143 = vmatprep.subr.mxu0 0.0
        %1144 = vmatpush2.msra.mxu0 0.0
        %1145 = vmatprep.subr.mxu0 0.0
        %1146 = vmatpush2.msra.mxu0 0.0
        %1147 = vmatprep.subr.mxu0 0.0
        %1148 = vmatpush2.msra.mxu0 0.0
        %1149 = vmatprep.subr.mxu0 0.0
        %1150 = vmatpush2.msra.mxu0 0.0
        %1151 = vmatprep.subr.mxu0 0.0
        %1152 = vmatpush2.msra.mxu0 0.0
        %1153 = vmatprep.subr.mxu0 0.0
        %1154 = vmatpush2.msra.mxu0 0.0
        %1155 = vmatprep.mubr.f32.mxu0 0.0
        %1156 = vmatmul.mubr.f32.gmra.mxu0 %v1018
        %v1157 = vpop.f32.mrf.mxu0
        %v1158 = vadd.f32 0.0, %v1157
        %v1159 = vpop.f32.mrf.mxu0
        %v1160 = vadd.f32 0.0, %v1159
        %1161 = vdwg.mxu0
        %1162 = vmatprep.subr.mxu0 0.0
        %1163 = vmatpush1.msra.mxu0 0.0
        %1164 = vmatprep.subr.mxu0 0.0
        %1165 = vmatpush1.msra.mxu0 0.0
        %1166 = vmatprep.subr.mxu0 0.0
        %1167 = vmatpush1.msra.mxu0 0.0
        %1168 = vmatprep.subr.mxu0 0.0
        %1169 = vmatpush1.msra.mxu0 0.0
        %1170 = vmatprep.subr.mxu0 0.0
        %1171 = vmatpush1.msra.mxu0 0.0
        %1172 = vmatprep.subr.mxu0 0.0
        %1173 = vmatpush1.msra.mxu0 0.0
        %1174 = vmatprep.subr.mxu0 0.0
        %1175 = vmatpush1.msra.mxu0 0.0
        %1176 = vmatprep.subr.mxu0 0.0
        %1177 = vmatpush1.msra.mxu0 0.0
        %1178 = vmatprep.subr.mxu0 %v247
        %1179 = vmatpush1.msra.mxu0 %v246
        %1180 = vmatprep.subr.mxu0 %v243
        %1181 = vmatpush1.msra.mxu0 %v242
        %1182 = vmatprep.subr.mxu0 %v239
        %1183 = vmatpush1.msra.mxu0 %v238
        %1184 = vmatprep.subr.mxu0 %v235
        %1185 = vmatpush1.msra.mxu0 %v234
        %1186 = vmatprep.subr.mxu0 %v231
        %1187 = vmatpush1.msra.mxu0 %v230
        %1188 = vmatprep.subr.mxu0 %v227
        %1189 = vmatpush1.msra.mxu0 %v226
        %1190 = vmatprep.subr.mxu0 %v223
        %1191 = vmatpush1.msra.mxu0 %v222
        %1192 = vmatprep.subr.mxu0 %v219
        %1193 = vmatpush1.msra.mxu0 %v218
        %1194 = vmatprep.subr.mxu0 0.0
        %1195 = vmatpush2.msra.mxu0 0.0
        %1196 = vmatprep.subr.mxu0 0.0
        %1197 = vmatpush2.msra.mxu0 0.0
        %1198 = vmatprep.subr.mxu0 0.0
        %1199 = vmatpush2.msra.mxu0 0.0
        %1200 = vmatprep.subr.mxu0 0.0
        %1201 = vmatpush2.msra.mxu0 0.0
        %1202 = vmatprep.subr.mxu0 0.0
        %1203 = vmatpush2.msra.mxu0 0.0
        %1204 = vmatprep.subr.mxu0 0.0
        %1205 = vmatpush2.msra.mxu0 0.0
        %1206 = vmatprep.subr.mxu0 0.0
        %1207 = vmatpush2.msra.mxu0 0.0
        %1208 = vmatprep.subr.mxu0 0.0
        %1209 = vmatpush2.msra.mxu0 0.0
        %1210 = vmatprep.subr.mxu0 0.0
        %1211 = vmatpush2.msra.mxu0 0.0
        %1212 = vmatprep.subr.mxu0 0.0
        %1213 = vmatpush2.msra.mxu0 0.0
        %1214 = vmatprep.subr.mxu0 0.0
        %1215 = vmatpush2.msra.mxu0 0.0
        %1216 = vmatprep.subr.mxu0 0.0
        %1217 = vmatpush2.msra.mxu0 0.0
        %1218 = vmatprep.subr.mxu0 0.0
        %1219 = vmatpush2.msra.mxu0 0.0
        %1220 = vmatprep.subr.mxu0 0.0
        %1221 = vmatpush2.msra.mxu0 0.0
        %1222 = vmatprep.subr.mxu0 0.0
        %1223 = vmatpush2.msra.mxu0 0.0
        %1224 = vmatprep.subr.mxu0 0.0
        %1225 = vmatpush2.msra.mxu0 0.0
        %1226 = vmatprep.mubr.f32.mxu0 0.0
        %1227 = vmatmul.mubr.f32.gmra.mxu0 %v285
        %v1228 = vpop.f32.mrf.mxu0
        %v1229 = vadd.f32 %v1087, %v1228
        %v1230 = vpop.f32.mrf.mxu0
        %v1231 = vadd.f32 %v1089, %v1230
        %1232 = vdwg.mxu0
        %1233 = vmatprep.subr.mxu0 0.0
        %1234 = vmatpush1.msra.mxu0 0.0
        %1235 = vmatprep.subr.mxu0 0.0
        %1236 = vmatpush1.msra.mxu0 0.0
        %1237 = vmatprep.subr.mxu0 0.0
        %1238 = vmatpush1.msra.mxu0 0.0
        %1239 = vmatprep.subr.mxu0 0.0
        %1240 = vmatpush1.msra.mxu0 0.0
        %1241 = vmatprep.subr.mxu0 0.0
        %1242 = vmatpush1.msra.mxu0 0.0
        %1243 = vmatprep.subr.mxu0 0.0
        %1244 = vmatpush1.msra.mxu0 0.0
        %1245 = vmatprep.subr.mxu0 0.0
        %1246 = vmatpush1.msra.mxu0 0.0
        %1247 = vmatprep.subr.mxu0 0.0
        %1248 = vmatpush1.msra.mxu0 0.0
        %1249 = vmatprep.subr.mxu0 %v249
        %1250 = vmatpush1.msra.mxu0 %v248
        %1251 = vmatprep.subr.mxu0 %v245
        %1252 = vmatpush1.msra.mxu0 %v244
        %1253 = vmatprep.subr.mxu0 %v241
        %1254 = vmatpush1.msra.mxu0 %v240
        %1255 = vmatprep.subr.mxu0 %v237
        %1256 = vmatpush1.msra.mxu0 %v236
        %1257 = vmatprep.subr.mxu0 %v233
        %1258 = vmatpush1.msra.mxu0 %v232
        %1259 = vmatprep.subr.mxu0 %v229
        %1260 = vmatpush1.msra.mxu0 %v228
        %1261 = vmatprep.subr.mxu0 %v225
        %1262 = vmatpush1.msra.mxu0 %v224
        %1263 = vmatprep.subr.mxu0 %v221
        %1264 = vmatpush1.msra.mxu0 %v220
        %1265 = vmatprep.subr.mxu0 0.0
        %1266 = vmatpush2.msra.mxu0 0.0
        %1267 = vmatprep.subr.mxu0 0.0
        %1268 = vmatpush2.msra.mxu0 0.0
        %1269 = vmatprep.subr.mxu0 0.0
        %1270 = vmatpush2.msra.mxu0 0.0
        %1271 = vmatprep.subr.mxu0 0.0
        %1272 = vmatpush2.msra.mxu0 0.0
        %1273 = vmatprep.subr.mxu0 0.0
        %1274 = vmatpush2.msra.mxu0 0.0
        %1275 = vmatprep.subr.mxu0 0.0
        %1276 = vmatpush2.msra.mxu0 0.0
        %1277 = vmatprep.subr.mxu0 0.0
        %1278 = vmatpush2.msra.mxu0 0.0
        %1279 = vmatprep.subr.mxu0 0.0
        %1280 = vmatpush2.msra.mxu0 0.0
        %1281 = vmatprep.subr.mxu0 0.0
        %1282 = vmatpush2.msra.mxu0 0.0
        %1283 = vmatprep.subr.mxu0 0.0
        %1284 = vmatpush2.msra.mxu0 0.0
        %1285 = vmatprep.subr.mxu0 0.0
        %1286 = vmatpush2.msra.mxu0 0.0
        %1287 = vmatprep.subr.mxu0 0.0
        %1288 = vmatpush2.msra.mxu0 0.0
        %1289 = vmatprep.subr.mxu0 0.0
        %1290 = vmatpush2.msra.mxu0 0.0
        %1291 = vmatprep.subr.mxu0 0.0
        %1292 = vmatpush2.msra.mxu0 0.0
        %1293 = vmatprep.subr.mxu0 0.0
        %1294 = vmatpush2.msra.mxu0 0.0
        %1295 = vmatprep.subr.mxu0 0.0
        %1296 = vmatpush2.msra.mxu0 0.0
        %1297 = vmatprep.mubr.f32.mxu0 0.0
        %1298 = vmatmul.mubr.f32.gmra.mxu0 %v285
        %v1299 = vpop.f32.mrf.mxu0
        %v1300 = vadd.f32 %v1158, %v1299
        %v1301 = vpop.f32.mrf.mxu0
        %v1302 = vadd.f32 %v1160, %v1301
        %1303 = vdwg.mxu0
        %v1304 = vld [vmem:[%s215] sm:$0xfe]
        %v1305 = vld [vmem:[%s215 + $0x8] sm:$0xfe]
        %v1306 = vld [vmem:[%s215 + $0x10] sm:$0xfe]
        %v1307 = vld [vmem:[%s215 + $0x18] sm:$0xfe]
        %v1308 = vld [vmem:[%s215 + $0x20] sm:$0x1]
        %v1309 = vld [vmem:[%s215 + $0x28] sm:$0x1]
        %v1310 = vld [vmem:[%s215 + $0x30] sm:$0x1]
        %v1311 = vld [vmem:[%s215 + $0x38] sm:$0x1]
        %v1312 = vmul.f32 %v1304, 1.442695
        %v1313 = vpow.pop %v1312
        %v1314 = vmul.f32 %v1308, 1.442695
        %v1315 = vpow.pop %v1314
        %v1316 = vmul.f32 %v1305, 3.1415927
        %v1317 = vmul.f32 %v1309, 3.1415927
        %v1318 = vmul.f32 %v1306, 1.442695
        %v1319 = vpow.pop %v1318
        %v1320 = vmul.f32 %v1310, 1.442695
        %v1321 = vpow.pop %v1320
        %v1322 = vmul.f32 %v1307, 3.1415927
        %v1323 = vmul.f32 %v1311, 3.1415927
        %v1324 = vand.u32 2147483647, %v1316
        %vm1325 = vcmp.le.f32.partialorder %v1324, 0.7853982
        %vm1326 = vcmp.lt.s32.totalorder %v1316, 0
        %v1327 = vand.u32 %v1316, 2139095040
        %v1328 = vshrl.u32 %v1327, 23
        %v1329 = vsub.s32 %v1328, 127
        %v1330 = vand.u32 2147483647, %v1316
        %v1331 = vand.u32 %v1330, 8388607
        %v1332 = vor.u32 %v1331, 8388608
        %v1333 = vsub.s32 0, %v1332
        %v1334 = vadd.s32 %v1329, 1
        %vm1335 = vcmp.gt.s32.totalorder %v1334, 0
        %v1336 = vsel %vm1335, %v1334, 0
        %v1337 = vshrl.u32 %v1336, 5
        %v1338 = vand.u32 %v1336, 31
        %v1339 = vsub.s32 32, %v1338
        %v1340 = vshrl.u32 683565275, %v1339
        %v1341 = vshll.u32 683565275, %v1338
        %v1342 = vshrl.u32 2475754826, %v1339
        %v1343 = vor.u32 %v1341, %v1342
        %v1344 = vshll.u32 2475754826, %v1338
        %v1345 = vshrl.u32 2131351028, %v1339
        %v1346 = vor.u32 %v1344, %v1345
        %v1347 = vshll.u32 2131351028, %v1338
        %v1348 = vshrl.u32 2102212464, %v1339
        %v1349 = vor.u32 %v1347, %v1348
        %v1350 = vshll.u32 2102212464, %v1338
        %v1351 = vshrl.u32 920167782, %v1339
        %v1352 = vor.u32 %v1350, %v1351
        %v1353 = vshll.u32 920167782, %v1338
        %v1354 = vshrl.u32 1326507024, %v1339
        %v1355 = vor.u32 %v1353, %v1354
        %vm1356 = vcmp.lt.s32.totalorder %v1337, 1
        %vm1357 = vcmp.lt.s32.totalorder %v1337, 2
        %vm1358 = vcmp.lt.s32.totalorder %v1337, 3
        %vm1359 = vcmp.lt.s32.totalorder %v1337, 4
        %v1360 = vsel %vm1356, %v1340, %v1343
        %v1361 = vsel %vm1359, %v1349, 2102212464
        %v1362 = vsel %vm1358, %v1346, %v1361
        %v1363 = vsel %vm1357, %v1360, %v1362
        %v1364 = vsel %vm1356, %v1343, %v1346
        %v1365 = vsel %vm1359, %v1352, 920167782
        %v1366 = vsel %vm1358, %v1349, %v1365
        %v1367 = vsel %vm1357, %v1364, %v1366
        %v1368 = vsel %vm1356, %v1346, %v1349
        %v1369 = vsel %vm1359, %v1355, 1326507024
        %v1370 = vsel %vm1358, %v1352, %v1369
        %v1371 = vsel %vm1357, %v1368, %v1370
        %v1372 = vshll.u32 %v1332, 8
        %v1373 = vmul.u32.u64.compose %v1372, %v1371
        %v1374 = vextract.low.u32 %v1373
        %v1375 = vextract.high.u32 %v1373
        %v1376 = vmul.u32.u64.compose %v1372, %v1367
        %v1377 = vextract.low.u32 %v1376
        %v1378 = vextract.high.u32 %v1376
        %v1379 = vmul.u32 %v1372, %v1363
        %v1380 = vadd.s32 %v1375, %v1377
        %vm1381 = vc.u32 %v1375, %v1377
        %v1382 = vadd.s32 %v1378, 1
        %v1383 = vsel %vm1381, %v1382, %v1378
        %v1384 = vadd.s32 %v1379, %v1383
        %v1385 = vadd.s32 %v1384, 536870912
        %v1386 = vshrl.u32 %v1385, 30
        %v1387 = vshll.u32 %v1386, 30
        %v1388 = vsub.s32 %v1384, %v1387
        %vm1389 = vcmp.lt.s32.totalorder %v1388, 0
        %v1390 = vsub.s32 0, %v1388
        %v1391 = vsel %vm1389, %v1390, %v1388
        %v1392 = vclz %v1391
        %v1393 = vsub.s32 %v1392, 2
        %vm1394 = vcmp.gt.s32.totalorder 0, %v1393
        %v1395 = vsel %vm1394, 0, %v1393
        %v1396 = vsub.s32 32, %v1395
        %v1397 = vshll.u32 %v1388, %v1395
        %v1398 = vshrl.u32 %v1380, %v1396
        %v1399 = vor.u32 %v1397, %v1398
        %v1400 = vsub.s32 4294967266, %v1395
        %v1401 = vadd.s32 %v1400, 127
        %v1402 = vshll.u32 %v1401, 23
        %v1403 = vor.u32 4788187, %v1402
        %v1404 = vand.u32 2147483647, %v1403
        %v1406 = vcvt.s32.f32 %v1399
        %v1407 = vmul.f32 %v1406, %v1404
        %v1408 = vxor.u32 %v1407, 2147483648
        %v1409 = vsel %vm1326, %v1408, %v1407
        %v1410 = vsub.s32 4, %v1386
        %v1411 = vsel %vm1326, %v1410, %v1386
        %v1412 = vsel %vm1325, %v1316, %v1409
        %v1413 = vsel %vm1325, 0, %v1411
        %v1414 = vcosq.f32.pop %v1412
        %v1415 = vsinq.f32.pop %v1412
        %vm1416 = vweird.f32 %v1316
        %v1417 = vand.u32 %v1413, 3
        %vm1418 = vcmp.lt.s32.totalorder %v1417, 2
        %vm1419 = vcmp.eq.s32.totalorder %v1417, 0
        %v1420 = vxor.u32 %v1415, 2147483648
        %v1421 = vsel %vm1419, %v1414, %v1420
        %vm1422 = vcmp.eq.s32.totalorder %v1417, 2
        %v1423 = vxor.u32 %v1414, 2147483648
        %v1424 = vsel %vm1422, %v1423, %v1415
        %v1425 = vsel %vm1418, %v1421, %v1424
        %v1426 = vsel %vm1416, nan, %v1425
        %v1427 = vand.u32 2147483647, %v1317
        %vm1428 = vcmp.le.f32.partialorder %v1427, 0.7853982
        %vm1429 = vcmp.lt.s32.totalorder %v1317, 0
        %v1430 = vand.u32 %v1317, 2139095040
        %v1431 = vshrl.u32 %v1430, 23
        %v1432 = vsub.s32 %v1431, 127
        %v1433 = vand.u32 2147483647, %v1317
        %v1434 = vand.u32 %v1433, 8388607
        %v1435 = vor.u32 %v1434, 8388608
        %v1436 = vsub.s32 0, %v1435
        %v1437 = vadd.s32 %v1432, 1
        %vm1438 = vcmp.gt.s32.totalorder %v1437, 0
        %v1439 = vsel %vm1438, %v1437, 0
        %v1440 = vshrl.u32 %v1439, 5
        %v1441 = vand.u32 %v1439, 31
        %v1442 = vsub.s32 32, %v1441
        %v1443 = vshrl.u32 683565275, %v1442
        %v1444 = vshll.u32 683565275, %v1441
        %v1445 = vshrl.u32 2475754826, %v1442
        %v1446 = vor.u32 %v1444, %v1445
        %v1447 = vshll.u32 2475754826, %v1441
        %v1448 = vshrl.u32 2131351028, %v1442
        %v1449 = vor.u32 %v1447, %v1448
        %v1450 = vshll.u32 2131351028, %v1441
        %v1451 = vshrl.u32 2102212464, %v1442
        %v1452 = vor.u32 %v1450, %v1451
        %v1453 = vshll.u32 2102212464, %v1441
        %v1454 = vshrl.u32 920167782, %v1442
        %v1455 = vor.u32 %v1453, %v1454
        %v1456 = vshll.u32 920167782, %v1441
        %v1457 = vshrl.u32 1326507024, %v1442
        %v1458 = vor.u32 %v1456, %v1457
        %vm1459 = vcmp.lt.s32.totalorder %v1440, 1
        %vm1460 = vcmp.lt.s32.totalorder %v1440, 2
        %vm1461 = vcmp.lt.s32.totalorder %v1440, 3
        %vm1462 = vcmp.lt.s32.totalorder %v1440, 4
        %v1463 = vsel %vm1459, %v1443, %v1446
        %v1464 = vsel %vm1462, %v1452, 2102212464
        %v1465 = vsel %vm1461, %v1449, %v1464
        %v1466 = vsel %vm1460, %v1463, %v1465
        %v1467 = vsel %vm1459, %v1446, %v1449
        %v1468 = vsel %vm1462, %v1455, 920167782
        %v1469 = vsel %vm1461, %v1452, %v1468
        %v1470 = vsel %vm1460, %v1467, %v1469
        %v1471 = vsel %vm1459, %v1449, %v1452
        %v1472 = vsel %vm1462, %v1458, 1326507024
        %v1473 = vsel %vm1461, %v1455, %v1472
        %v1474 = vsel %vm1460, %v1471, %v1473
        %v1475 = vshll.u32 %v1435, 8
        %v1476 = vmul.u32.u64.compose %v1475, %v1474
        %v1477 = vextract.low.u32 %v1476
        %v1478 = vextract.high.u32 %v1476
        %v1479 = vmul.u32.u64.compose %v1475, %v1470
        %v1480 = vextract.low.u32 %v1479
        %v1481 = vextract.high.u32 %v1479
        %v1482 = vmul.u32 %v1475, %v1466
        %v1483 = vadd.s32 %v1478, %v1480
        %vm1484 = vc.u32 %v1478, %v1480
        %v1485 = vadd.s32 %v1481, 1
        %v1486 = vsel %vm1484, %v1485, %v1481
        %v1487 = vadd.s32 %v1482, %v1486
        %v1488 = vadd.s32 %v1487, 536870912
        %v1489 = vshrl.u32 %v1488, 30
        %v1490 = vshll.u32 %v1489, 30
        %v1491 = vsub.s32 %v1487, %v1490
        %vm1492 = vcmp.lt.s32.totalorder %v1491, 0
        %v1493 = vsub.s32 0, %v1491
        %v1494 = vsel %vm1492, %v1493, %v1491
        %v1495 = vclz %v1494
        %v1496 = vsub.s32 %v1495, 2
        %vm1497 = vcmp.gt.s32.totalorder 0, %v1496
        %v1498 = vsel %vm1497, 0, %v1496
        %v1499 = vsub.s32 32, %v1498
        %v1500 = vshll.u32 %v1491, %v1498
        %v1501 = vshrl.u32 %v1483, %v1499
        %v1502 = vor.u32 %v1500, %v1501
        %v1503 = vsub.s32 4294967266, %v1498
        %v1504 = vadd.s32 %v1503, 127
        %v1505 = vshll.u32 %v1504, 23
        %v1506 = vor.u32 4788187, %v1505
        %v1507 = vand.u32 2147483647, %v1506
        %v1509 = vcvt.s32.f32 %v1502
        %v1510 = vmul.f32 %v1509, %v1507
        %v1511 = vxor.u32 %v1510, 2147483648
        %v1512 = vsel %vm1429, %v1511, %v1510
        %v1513 = vsub.s32 4, %v1489
        %v1514 = vsel %vm1429, %v1513, %v1489
        %v1515 = vsel %vm1428, %v1317, %v1512
        %v1516 = vsel %vm1428, 0, %v1514
        %v1517 = vcosq.f32.pop %v1515
        %v1518 = vsinq.f32.pop %v1515
        %vm1519 = vweird.f32 %v1317
        %v1520 = vand.u32 %v1516, 3
        %vm1521 = vcmp.lt.s32.totalorder %v1520, 2
        %vm1522 = vcmp.eq.s32.totalorder %v1520, 0
        %v1523 = vxor.u32 %v1518, 2147483648
        %v1524 = vsel %vm1522, %v1517, %v1523
        %vm1525 = vcmp.eq.s32.totalorder %v1520, 2
        %v1526 = vxor.u32 %v1517, 2147483648
        %v1527 = vsel %vm1525, %v1526, %v1518
        %v1528 = vsel %vm1521, %v1524, %v1527
        %v1529 = vsel %vm1519, nan, %v1528
        %v1530 = vmul.f32 %v1313, %v1426
        %v1531 = vmul.f32 %v1315, %v1529
        %v1532 = vand.u32 2147483647, %v1316
        %vm1533 = vcmp.le.f32.partialorder %v1532, 0.7853982
        %vm1534 = vcmp.lt.s32.totalorder %v1316, 0
        %v1535 = vand.u32 %v1316, 2139095040
        %v1536 = vshrl.u32 %v1535, 23
        %v1537 = vsub.s32 %v1536, 127
        %v1538 = vand.u32 2147483647, %v1316
        %v1539 = vand.u32 %v1538, 8388607
        %v1540 = vor.u32 %v1539, 8388608
        %v1541 = vsub.s32 0, %v1540
        %v1542 = vadd.s32 %v1537, 1
        %vm1543 = vcmp.gt.s32.totalorder %v1542, 0
        %v1544 = vsel %vm1543, %v1542, 0
        %v1545 = vshrl.u32 %v1544, 5
        %v1546 = vand.u32 %v1544, 31
        %v1547 = vsub.s32 32, %v1546
        %v1548 = vshrl.u32 683565275, %v1547
        %v1549 = vshll.u32 683565275, %v1546
        %v1550 = vshrl.u32 2475754826, %v1547
        %v1551 = vor.u32 %v1549, %v1550
        %v1552 = vshll.u32 2475754826, %v1546
        %v1553 = vshrl.u32 2131351028, %v1547
        %v1554 = vor.u32 %v1552, %v1553
        %v1555 = vshll.u32 2131351028, %v1546
        %v1556 = vshrl.u32 2102212464, %v1547
        %v1557 = vor.u32 %v1555, %v1556
        %v1558 = vshll.u32 2102212464, %v1546
        %v1559 = vshrl.u32 920167782, %v1547
        %v1560 = vor.u32 %v1558, %v1559
        %v1561 = vshll.u32 920167782, %v1546
        %v1562 = vshrl.u32 1326507024, %v1547
        %v1563 = vor.u32 %v1561, %v1562
        %vm1564 = vcmp.lt.s32.totalorder %v1545, 1
        %vm1565 = vcmp.lt.s32.totalorder %v1545, 2
        %vm1566 = vcmp.lt.s32.totalorder %v1545, 3
        %vm1567 = vcmp.lt.s32.totalorder %v1545, 4
        %v1568 = vsel %vm1564, %v1548, %v1551
        %v1569 = vsel %vm1567, %v1557, 2102212464
        %v1570 = vsel %vm1566, %v1554, %v1569
        %v1571 = vsel %vm1565, %v1568, %v1570
        %v1572 = vsel %vm1564, %v1551, %v1554
        %v1573 = vsel %vm1567, %v1560, 920167782
        %v1574 = vsel %vm1566, %v1557, %v1573
        %v1575 = vsel %vm1565, %v1572, %v1574
        %v1576 = vsel %vm1564, %v1554, %v1557
        %v1577 = vsel %vm1567, %v1563, 1326507024
        %v1578 = vsel %vm1566, %v1560, %v1577
        %v1579 = vsel %vm1565, %v1576, %v1578
        %v1580 = vshll.u32 %v1540, 8
        %v1581 = vmul.u32.u64.compose %v1580, %v1579
        %v1582 = vextract.low.u32 %v1581
        %v1583 = vextract.high.u32 %v1581
        %v1584 = vmul.u32.u64.compose %v1580, %v1575
        %v1585 = vextract.low.u32 %v1584
        %v1586 = vextract.high.u32 %v1584
        %v1587 = vmul.u32 %v1580, %v1571
        %v1588 = vadd.s32 %v1583, %v1585
        %vm1589 = vc.u32 %v1583, %v1585
        %v1590 = vadd.s32 %v1586, 1
        %v1591 = vsel %vm1589, %v1590, %v1586
        %v1592 = vadd.s32 %v1587, %v1591
        %v1593 = vadd.s32 %v1592, 536870912
        %v1594 = vshrl.u32 %v1593, 30
        %v1595 = vshll.u32 %v1594, 30
        %v1596 = vsub.s32 %v1592, %v1595
        %vm1597 = vcmp.lt.s32.totalorder %v1596, 0
        %v1598 = vsub.s32 0, %v1596
        %v1599 = vsel %vm1597, %v1598, %v1596
        %v1600 = vclz %v1599
        %v1601 = vsub.s32 %v1600, 2
        %vm1602 = vcmp.gt.s32.totalorder 0, %v1601
        %v1603 = vsel %vm1602, 0, %v1601
        %v1604 = vsub.s32 32, %v1603
        %v1605 = vshll.u32 %v1596, %v1603
        %v1606 = vshrl.u32 %v1588, %v1604
        %v1607 = vor.u32 %v1605, %v1606
        %v1608 = vsub.s32 4294967266, %v1603
        %v1609 = vadd.s32 %v1608, 127
        %v1610 = vshll.u32 %v1609, 23
        %v1611 = vor.u32 4788187, %v1610
        %v1612 = vand.u32 2147483647, %v1611
        %v1614 = vcvt.s32.f32 %v1607
        %v1615 = vmul.f32 %v1614, %v1612
        %v1616 = vxor.u32 %v1615, 2147483648
        %v1617 = vsel %vm1534, %v1616, %v1615
        %v1618 = vsub.s32 4, %v1594
        %v1619 = vsel %vm1534, %v1618, %v1594
        %v1620 = vsel %vm1533, %v1316, %v1617
        %v1621 = vsel %vm1533, 0, %v1619
        %v1622 = vcosq.f32.pop %v1620
        %v1623 = vsinq.f32.pop %v1620
        %vm1624 = vweird.f32 %v1316
        %v1625 = vadd.s32 %v1621, 3
        %v1626 = vand.u32 %v1625, 3
        %vm1627 = vcmp.lt.s32.totalorder %v1626, 2
        %vm1628 = vcmp.eq.s32.totalorder %v1626, 0
        %v1629 = vxor.u32 %v1623, 2147483648
        %v1630 = vsel %vm1628, %v1622, %v1629
        %vm1631 = vcmp.eq.s32.totalorder %v1626, 2
        %v1632 = vxor.u32 %v1622, 2147483648
        %v1633 = vsel %vm1631, %v1632, %v1623
        %v1634 = vsel %vm1627, %v1630, %v1633
        %v1635 = vsel %vm1624, nan, %v1634
        %v1636 = vand.u32 2147483647, %v1317
        %vm1637 = vcmp.le.f32.partialorder %v1636, 0.7853982
        %vm1638 = vcmp.lt.s32.totalorder %v1317, 0
        %v1639 = vand.u32 %v1317, 2139095040
        %v1640 = vshrl.u32 %v1639, 23
        %v1641 = vsub.s32 %v1640, 127
        %v1642 = vand.u32 2147483647, %v1317
        %v1643 = vand.u32 %v1642, 8388607
        %v1644 = vor.u32 %v1643, 8388608
        %v1645 = vsub.s32 0, %v1644
        %v1646 = vadd.s32 %v1641, 1
        %vm1647 = vcmp.gt.s32.totalorder %v1646, 0
        %v1648 = vsel %vm1647, %v1646, 0
        %v1649 = vshrl.u32 %v1648, 5
        %v1650 = vand.u32 %v1648, 31
        %v1651 = vsub.s32 32, %v1650
        %v1652 = vshrl.u32 683565275, %v1651
        %v1653 = vshll.u32 683565275, %v1650
        %v1654 = vshrl.u32 2475754826, %v1651
        %v1655 = vor.u32 %v1653, %v1654
        %v1656 = vshll.u32 2475754826, %v1650
        %v1657 = vshrl.u32 2131351028, %v1651
        %v1658 = vor.u32 %v1656, %v1657
        %v1659 = vshll.u32 2131351028, %v1650
        %v1660 = vshrl.u32 2102212464, %v1651
        %v1661 = vor.u32 %v1659, %v1660
        %v1662 = vshll.u32 2102212464, %v1650
        %v1663 = vshrl.u32 920167782, %v1651
        %v1664 = vor.u32 %v1662, %v1663
        %v1665 = vshll.u32 920167782, %v1650
        %v1666 = vshrl.u32 1326507024, %v1651
        %v1667 = vor.u32 %v1665, %v1666
        %vm1668 = vcmp.lt.s32.totalorder %v1649, 1
        %vm1669 = vcmp.lt.s32.totalorder %v1649, 2
        %vm1670 = vcmp.lt.s32.totalorder %v1649, 3
        %vm1671 = vcmp.lt.s32.totalorder %v1649, 4
        %v1672 = vsel %vm1668, %v1652, %v1655
        %v1673 = vsel %vm1671, %v1661, 2102212464
        %v1674 = vsel %vm1670, %v1658, %v1673
        %v1675 = vsel %vm1669, %v1672, %v1674
        %v1676 = vsel %vm1668, %v1655, %v1658
        %v1677 = vsel %vm1671, %v1664, 920167782
        %v1678 = vsel %vm1670, %v1661, %v1677
        %v1679 = vsel %vm1669, %v1676, %v1678
        %v1680 = vsel %vm1668, %v1658, %v1661
        %v1681 = vsel %vm1671, %v1667, 1326507024
        %v1682 = vsel %vm1670, %v1664, %v1681
        %v1683 = vsel %vm1669, %v1680, %v1682
        %v1684 = vshll.u32 %v1644, 8
        %v1685 = vmul.u32.u64.compose %v1684, %v1683
        %v1686 = vextract.low.u32 %v1685
        %v1687 = vextract.high.u32 %v1685
        %v1688 = vmul.u32.u64.compose %v1684, %v1679
        %v1689 = vextract.low.u32 %v1688
        %v1690 = vextract.high.u32 %v1688
        %v1691 = vmul.u32 %v1684, %v1675
        %v1692 = vadd.s32 %v1687, %v1689
        %vm1693 = vc.u32 %v1687, %v1689
        %v1694 = vadd.s32 %v1690, 1
        %v1695 = vsel %vm1693, %v1694, %v1690
        %v1696 = vadd.s32 %v1691, %v1695
        %v1697 = vadd.s32 %v1696, 536870912
        %v1698 = vshrl.u32 %v1697, 30
        %v1699 = vshll.u32 %v1698, 30
        %v1700 = vsub.s32 %v1696, %v1699
        %vm1701 = vcmp.lt.s32.totalorder %v1700, 0
        %v1702 = vsub.s32 0, %v1700
        %v1703 = vsel %vm1701, %v1702, %v1700
        %v1704 = vclz %v1703
        %v1705 = vsub.s32 %v1704, 2
        %vm1706 = vcmp.gt.s32.totalorder 0, %v1705
        %v1707 = vsel %vm1706, 0, %v1705
        %v1708 = vsub.s32 32, %v1707
        %v1709 = vshll.u32 %v1700, %v1707
        %v1710 = vshrl.u32 %v1692, %v1708
        %v1711 = vor.u32 %v1709, %v1710
        %v1712 = vsub.s32 4294967266, %v1707
        %v1713 = vadd.s32 %v1712, 127
        %v1714 = vshll.u32 %v1713, 23
        %v1715 = vor.u32 4788187, %v1714
        %v1716 = vand.u32 2147483647, %v1715
        %v1718 = vcvt.s32.f32 %v1711
        %v1719 = vmul.f32 %v1718, %v1716
        %v1720 = vxor.u32 %v1719, 2147483648
        %v1721 = vsel %vm1638, %v1720, %v1719
        %v1722 = vsub.s32 4, %v1698
        %v1723 = vsel %vm1638, %v1722, %v1698
        %v1724 = vsel %vm1637, %v1317, %v1721
        %v1725 = vsel %vm1637, 0, %v1723
        %v1726 = vcosq.f32.pop %v1724
        %v1727 = vsinq.f32.pop %v1724
        %vm1728 = vweird.f32 %v1317
        %v1729 = vadd.s32 %v1725, 3
        %v1730 = vand.u32 %v1729, 3
        %vm1731 = vcmp.lt.s32.totalorder %v1730, 2
        %vm1732 = vcmp.eq.s32.totalorder %v1730, 0
        %v1733 = vxor.u32 %v1727, 2147483648
        %v1734 = vsel %vm1732, %v1726, %v1733
        %vm1735 = vcmp.eq.s32.totalorder %v1730, 2
        %v1736 = vxor.u32 %v1726, 2147483648
        %v1737 = vsel %vm1735, %v1736, %v1727
        %v1738 = vsel %vm1731, %v1734, %v1737
        %v1739 = vsel %vm1728, nan, %v1738
        %v1740 = vmul.f32 %v1313, %v1635
        %v1741 = vmul.f32 %v1315, %v1739
        %v1742 = vand.u32 2147483647, %v1322
        %vm1743 = vcmp.le.f32.partialorder %v1742, 0.7853982
        %vm1744 = vcmp.lt.s32.totalorder %v1322, 0
        %v1745 = vand.u32 %v1322, 2139095040
        %v1746 = vshrl.u32 %v1745, 23
        %v1747 = vsub.s32 %v1746, 127
        %v1748 = vand.u32 2147483647, %v1322
        %v1749 = vand.u32 %v1748, 8388607
        %v1750 = vor.u32 %v1749, 8388608
        %v1751 = vsub.s32 0, %v1750
        %v1752 = vadd.s32 %v1747, 1
        %vm1753 = vcmp.gt.s32.totalorder %v1752, 0
        %v1754 = vsel %vm1753, %v1752, 0
        %v1755 = vshrl.u32 %v1754, 5
        %v1756 = vand.u32 %v1754, 31
        %v1757 = vsub.s32 32, %v1756
        %v1758 = vshrl.u32 683565275, %v1757
        %v1759 = vshll.u32 683565275, %v1756
        %v1760 = vshrl.u32 2475754826, %v1757
        %v1761 = vor.u32 %v1759, %v1760
        %v1762 = vshll.u32 2475754826, %v1756
        %v1763 = vshrl.u32 2131351028, %v1757
        %v1764 = vor.u32 %v1762, %v1763
        %v1765 = vshll.u32 2131351028, %v1756
        %v1766 = vshrl.u32 2102212464, %v1757
        %v1767 = vor.u32 %v1765, %v1766
        %v1768 = vshll.u32 2102212464, %v1756
        %v1769 = vshrl.u32 920167782, %v1757
        %v1770 = vor.u32 %v1768, %v1769
        %v1771 = vshll.u32 920167782, %v1756
        %v1772 = vshrl.u32 1326507024, %v1757
        %v1773 = vor.u32 %v1771, %v1772
        %vm1774 = vcmp.lt.s32.totalorder %v1755, 1
        %vm1775 = vcmp.lt.s32.totalorder %v1755, 2
        %vm1776 = vcmp.lt.s32.totalorder %v1755, 3
        %vm1777 = vcmp.lt.s32.totalorder %v1755, 4
        %v1778 = vsel %vm1774, %v1758, %v1761
        %v1779 = vsel %vm1777, %v1767, 2102212464
        %v1780 = vsel %vm1776, %v1764, %v1779
        %v1781 = vsel %vm1775, %v1778, %v1780
        %v1782 = vsel %vm1774, %v1761, %v1764
        %v1783 = vsel %vm1777, %v1770, 920167782
        %v1784 = vsel %vm1776, %v1767, %v1783
        %v1785 = vsel %vm1775, %v1782, %v1784
        %v1786 = vsel %vm1774, %v1764, %v1767
        %v1787 = vsel %vm1777, %v1773, 1326507024
        %v1788 = vsel %vm1776, %v1770, %v1787
        %v1789 = vsel %vm1775, %v1786, %v1788
        %v1790 = vshll.u32 %v1750, 8
        %v1791 = vmul.u32.u64.compose %v1790, %v1789
        %v1792 = vextract.low.u32 %v1791
        %v1793 = vextract.high.u32 %v1791
        %v1794 = vmul.u32.u64.compose %v1790, %v1785
        %v1795 = vextract.low.u32 %v1794
        %v1796 = vextract.high.u32 %v1794
        %v1797 = vmul.u32 %v1790, %v1781
        %v1798 = vadd.s32 %v1793, %v1795
        %vm1799 = vc.u32 %v1793, %v1795
        %v1800 = vadd.s32 %v1796, 1
        %v1801 = vsel %vm1799, %v1800, %v1796
        %v1802 = vadd.s32 %v1797, %v1801
        %v1803 = vadd.s32 %v1802, 536870912
        %v1804 = vshrl.u32 %v1803, 30
        %v1805 = vshll.u32 %v1804, 30
        %v1806 = vsub.s32 %v1802, %v1805
        %vm1807 = vcmp.lt.s32.totalorder %v1806, 0
        %v1808 = vsub.s32 0, %v1806
        %v1809 = vsel %vm1807, %v1808, %v1806
        %v1810 = vclz %v1809
        %v1811 = vsub.s32 %v1810, 2
        %vm1812 = vcmp.gt.s32.totalorder 0, %v1811
        %v1813 = vsel %vm1812, 0, %v1811
        %v1814 = vsub.s32 32, %v1813
        %v1815 = vshll.u32 %v1806, %v1813
        %v1816 = vshrl.u32 %v1798, %v1814
        %v1817 = vor.u32 %v1815, %v1816
        %v1818 = vsub.s32 4294967266, %v1813
        %v1819 = vadd.s32 %v1818, 127
        %v1820 = vshll.u32 %v1819, 23
        %v1821 = vor.u32 4788187, %v1820
        %v1822 = vand.u32 2147483647, %v1821
        %v1824 = vcvt.s32.f32 %v1817
        %v1825 = vmul.f32 %v1824, %v1822
        %v1826 = vxor.u32 %v1825, 2147483648
        %v1827 = vsel %vm1744, %v1826, %v1825
        %v1828 = vsub.s32 4, %v1804
        %v1829 = vsel %vm1744, %v1828, %v1804
        %v1830 = vsel %vm1743, %v1322, %v1827
        %v1831 = vsel %vm1743, 0, %v1829
        %v1832 = vcosq.f32.pop %v1830
        %v1833 = vsinq.f32.pop %v1830
        %vm1834 = vweird.f32 %v1322
        %v1835 = vand.u32 %v1831, 3
        %vm1836 = vcmp.lt.s32.totalorder %v1835, 2
        %vm1837 = vcmp.eq.s32.totalorder %v1835, 0
        %v1838 = vxor.u32 %v1833, 2147483648
        %v1839 = vsel %vm1837, %v1832, %v1838
        %vm1840 = vcmp.eq.s32.totalorder %v1835, 2
        %v1841 = vxor.u32 %v1832, 2147483648
        %v1842 = vsel %vm1840, %v1841, %v1833
        %v1843 = vsel %vm1836, %v1839, %v1842
        %v1844 = vsel %vm1834, nan, %v1843
        %v1845 = vand.u32 2147483647, %v1323
        %vm1846 = vcmp.le.f32.partialorder %v1845, 0.7853982
        %vm1847 = vcmp.lt.s32.totalorder %v1323, 0
        %v1848 = vand.u32 %v1323, 2139095040
        %v1849 = vshrl.u32 %v1848, 23
        %v1850 = vsub.s32 %v1849, 127
        %v1851 = vand.u32 2147483647, %v1323
        %v1852 = vand.u32 %v1851, 8388607
        %v1853 = vor.u32 %v1852, 8388608
        %v1854 = vsub.s32 0, %v1853
        %v1855 = vadd.s32 %v1850, 1
        %vm1856 = vcmp.gt.s32.totalorder %v1855, 0
        %v1857 = vsel %vm1856, %v1855, 0
        %v1858 = vshrl.u32 %v1857, 5
        %v1859 = vand.u32 %v1857, 31
        %v1860 = vsub.s32 32, %v1859
        %v1861 = vshrl.u32 683565275, %v1860
        %v1862 = vshll.u32 683565275, %v1859
        %v1863 = vshrl.u32 2475754826, %v1860
        %v1864 = vor.u32 %v1862, %v1863
        %v1865 = vshll.u32 2475754826, %v1859
        %v1866 = vshrl.u32 2131351028, %v1860
        %v1867 = vor.u32 %v1865, %v1866
        %v1868 = vshll.u32 2131351028, %v1859
        %v1869 = vshrl.u32 2102212464, %v1860
        %v1870 = vor.u32 %v1868, %v1869
        %v1871 = vshll.u32 2102212464, %v1859
        %v1872 = vshrl.u32 920167782, %v1860
        %v1873 = vor.u32 %v1871, %v1872
        %v1874 = vshll.u32 920167782, %v1859
        %v1875 = vshrl.u32 1326507024, %v1860
        %v1876 = vor.u32 %v1874, %v1875
        %vm1877 = vcmp.lt.s32.totalorder %v1858, 1
        %vm1878 = vcmp.lt.s32.totalorder %v1858, 2
        %vm1879 = vcmp.lt.s32.totalorder %v1858, 3
        %vm1880 = vcmp.lt.s32.totalorder %v1858, 4
        %v1881 = vsel %vm1877, %v1861, %v1864
        %v1882 = vsel %vm1880, %v1870, 2102212464
        %v1883 = vsel %vm1879, %v1867, %v1882
        %v1884 = vsel %vm1878, %v1881, %v1883
        %v1885 = vsel %vm1877, %v1864, %v1867
        %v1886 = vsel %vm1880, %v1873, 920167782
        %v1887 = vsel %vm1879, %v1870, %v1886
        %v1888 = vsel %vm1878, %v1885, %v1887
        %v1889 = vsel %vm1877, %v1867, %v1870
        %v1890 = vsel %vm1880, %v1876, 1326507024
        %v1891 = vsel %vm1879, %v1873, %v1890
        %v1892 = vsel %vm1878, %v1889, %v1891
        %v1893 = vshll.u32 %v1853, 8
        %v1894 = vmul.u32.u64.compose %v1893, %v1892
        %v1895 = vextract.low.u32 %v1894
        %v1896 = vextract.high.u32 %v1894
        %v1897 = vmul.u32.u64.compose %v1893, %v1888
        %v1898 = vextract.low.u32 %v1897
        %v1899 = vextract.high.u32 %v1897
        %v1900 = vmul.u32 %v1893, %v1884
        %v1901 = vadd.s32 %v1896, %v1898
        %vm1902 = vc.u32 %v1896, %v1898
        %v1903 = vadd.s32 %v1899, 1
        %v1904 = vsel %vm1902, %v1903, %v1899
        %v1905 = vadd.s32 %v1900, %v1904
        %v1906 = vadd.s32 %v1905, 536870912
        %v1907 = vshrl.u32 %v1906, 30
        %v1908 = vshll.u32 %v1907, 30
        %v1909 = vsub.s32 %v1905, %v1908
        %vm1910 = vcmp.lt.s32.totalorder %v1909, 0
        %v1911 = vsub.s32 0, %v1909
        %v1912 = vsel %vm1910, %v1911, %v1909
        %v1913 = vclz %v1912
        %v1914 = vsub.s32 %v1913, 2
        %vm1915 = vcmp.gt.s32.totalorder 0, %v1914
        %v1916 = vsel %vm1915, 0, %v1914
        %v1917 = vsub.s32 32, %v1916
        %v1918 = vshll.u32 %v1909, %v1916
        %v1919 = vshrl.u32 %v1901, %v1917
        %v1920 = vor.u32 %v1918, %v1919
        %v1921 = vsub.s32 4294967266, %v1916
        %v1922 = vadd.s32 %v1921, 127
        %v1923 = vshll.u32 %v1922, 23
        %v1924 = vor.u32 4788187, %v1923
        %v1925 = vand.u32 2147483647, %v1924
        %v1927 = vcvt.s32.f32 %v1920
        %v1928 = vmul.f32 %v1927, %v1925
        %v1929 = vxor.u32 %v1928, 2147483648
        %v1930 = vsel %vm1847, %v1929, %v1928
        %v1931 = vsub.s32 4, %v1907
        %v1932 = vsel %vm1847, %v1931, %v1907
        %v1933 = vsel %vm1846, %v1323, %v1930
        %v1934 = vsel %vm1846, 0, %v1932
        %v1935 = vcosq.f32.pop %v1933
        %v1936 = vsinq.f32.pop %v1933
        %vm1937 = vweird.f32 %v1323
        %v1938 = vand.u32 %v1934, 3
        %vm1939 = vcmp.lt.s32.totalorder %v1938, 2
        %vm1940 = vcmp.eq.s32.totalorder %v1938, 0
        %v1941 = vxor.u32 %v1936, 2147483648
        %v1942 = vsel %vm1940, %v1935, %v1941
        %vm1943 = vcmp.eq.s32.totalorder %v1938, 2
        %v1944 = vxor.u32 %v1935, 2147483648
        %v1945 = vsel %vm1943, %v1944, %v1936
        %v1946 = vsel %vm1939, %v1942, %v1945
        %v1947 = vsel %vm1937, nan, %v1946
        %v1948 = vmul.f32 %v1319, %v1844
        %v1949 = vmul.f32 %v1321, %v1947
        %v1950 = vand.u32 2147483647, %v1322
        %vm1951 = vcmp.le.f32.partialorder %v1950, 0.7853982
        %vm1952 = vcmp.lt.s32.totalorder %v1322, 0
        %v1953 = vand.u32 %v1322, 2139095040
        %v1954 = vshrl.u32 %v1953, 23
        %v1955 = vsub.s32 %v1954, 127
        %v1956 = vand.u32 2147483647, %v1322
        %v1957 = vand.u32 %v1956, 8388607
        %v1958 = vor.u32 %v1957, 8388608
        %v1959 = vsub.s32 0, %v1958
        %v1960 = vadd.s32 %v1955, 1
        %vm1961 = vcmp.gt.s32.totalorder %v1960, 0
        %v1962 = vsel %vm1961, %v1960, 0
        %v1963 = vshrl.u32 %v1962, 5
        %v1964 = vand.u32 %v1962, 31
        %v1965 = vsub.s32 32, %v1964
        %v1966 = vshrl.u32 683565275, %v1965
        %v1967 = vshll.u32 683565275, %v1964
        %v1968 = vshrl.u32 2475754826, %v1965
        %v1969 = vor.u32 %v1967, %v1968
        %v1970 = vshll.u32 2475754826, %v1964
        %v1971 = vshrl.u32 2131351028, %v1965
        %v1972 = vor.u32 %v1970, %v1971
        %v1973 = vshll.u32 2131351028, %v1964
        %v1974 = vshrl.u32 2102212464, %v1965
        %v1975 = vor.u32 %v1973, %v1974
        %v1976 = vshll.u32 2102212464, %v1964
        %v1977 = vshrl.u32 920167782, %v1965
        %v1978 = vor.u32 %v1976, %v1977
        %v1979 = vshll.u32 920167782, %v1964
        %v1980 = vshrl.u32 1326507024, %v1965
        %v1981 = vor.u32 %v1979, %v1980
        %vm1982 = vcmp.lt.s32.totalorder %v1963, 1
        %vm1983 = vcmp.lt.s32.totalorder %v1963, 2
        %vm1984 = vcmp.lt.s32.totalorder %v1963, 3
        %vm1985 = vcmp.lt.s32.totalorder %v1963, 4
        %v1986 = vsel %vm1982, %v1966, %v1969
        %v1987 = vsel %vm1985, %v1975, 2102212464
        %v1988 = vsel %vm1984, %v1972, %v1987
        %v1989 = vsel %vm1983, %v1986, %v1988
        %v1990 = vsel %vm1982, %v1969, %v1972
        %v1991 = vsel %vm1985, %v1978, 920167782
        %v1992 = vsel %vm1984, %v1975, %v1991
        %v1993 = vsel %vm1983, %v1990, %v1992
        %v1994 = vsel %vm1982, %v1972, %v1975
        %v1995 = vsel %vm1985, %v1981, 1326507024
        %v1996 = vsel %vm1984, %v1978, %v1995
        %v1997 = vsel %vm1983, %v1994, %v1996
        %v1998 = vshll.u32 %v1958, 8
        %v1999 = vmul.u32.u64.compose %v1998, %v1997
        %v2000 = vextract.low.u32 %v1999
        %v2001 = vextract.high.u32 %v1999
        %v2002 = vmul.u32.u64.compose %v1998, %v1993
        %v2003 = vextract.low.u32 %v2002
        %v2004 = vextract.high.u32 %v2002
        %v2005 = vmul.u32 %v1998, %v1989
        %v2006 = vadd.s32 %v2001, %v2003
        %vm2007 = vc.u32 %v2001, %v2003
        %v2008 = vadd.s32 %v2004, 1
        %v2009 = vsel %vm2007, %v2008, %v2004
        %v2010 = vadd.s32 %v2005, %v2009
        %v2011 = vadd.s32 %v2010, 536870912
        %v2012 = vshrl.u32 %v2011, 30
        %v2013 = vshll.u32 %v2012, 30
        %v2014 = vsub.s32 %v2010, %v2013
        %vm2015 = vcmp.lt.s32.totalorder %v2014, 0
        %v2016 = vsub.s32 0, %v2014
        %v2017 = vsel %vm2015, %v2016, %v2014
        %v2018 = vclz %v2017
        %v2019 = vsub.s32 %v2018, 2
        %vm2020 = vcmp.gt.s32.totalorder 0, %v2019
        %v2021 = vsel %vm2020, 0, %v2019
        %v2022 = vsub.s32 32, %v2021
        %v2023 = vshll.u32 %v2014, %v2021
        %v2024 = vshrl.u32 %v2006, %v2022
        %v2025 = vor.u32 %v2023, %v2024
        %v2026 = vsub.s32 4294967266, %v2021
        %v2027 = vadd.s32 %v2026, 127
        %v2028 = vshll.u32 %v2027, 23
        %v2029 = vor.u32 4788187, %v2028
        %v2030 = vand.u32 2147483647, %v2029
        %v2032 = vcvt.s32.f32 %v2025
        %v2033 = vmul.f32 %v2032, %v2030
        %v2034 = vxor.u32 %v2033, 2147483648
        %v2035 = vsel %vm1952, %v2034, %v2033
        %v2036 = vsub.s32 4, %v2012
        %v2037 = vsel %vm1952, %v2036, %v2012
        %v2038 = vsel %vm1951, %v1322, %v2035
        %v2039 = vsel %vm1951, 0, %v2037
        %v2040 = vcosq.f32.pop %v2038
        %v2041 = vsinq.f32.pop %v2038
        %vm2042 = vweird.f32 %v1322
        %v2043 = vadd.s32 %v2039, 3
        %v2044 = vand.u32 %v2043, 3
        %vm2045 = vcmp.lt.s32.totalorder %v2044, 2
        %vm2046 = vcmp.eq.s32.totalorder %v2044, 0
        %v2047 = vxor.u32 %v2041, 2147483648
        %v2048 = vsel %vm2046, %v2040, %v2047
        %vm2049 = vcmp.eq.s32.totalorder %v2044, 2
        %v2050 = vxor.u32 %v2040, 2147483648
        %v2051 = vsel %vm2049, %v2050, %v2041
        %v2052 = vsel %vm2045, %v2048, %v2051
        %v2053 = vsel %vm2042, nan, %v2052
        %v2054 = vand.u32 2147483647, %v1323
        %vm2055 = vcmp.le.f32.partialorder %v2054, 0.7853982
        %vm2056 = vcmp.lt.s32.totalorder %v1323, 0
        %v2057 = vand.u32 %v1323, 2139095040
        %v2058 = vshrl.u32 %v2057, 23
        %v2059 = vsub.s32 %v2058, 127
        %v2060 = vand.u32 2147483647, %v1323
        %v2061 = vand.u32 %v2060, 8388607
        %v2062 = vor.u32 %v2061, 8388608
        %v2063 = vsub.s32 0, %v2062
        %v2064 = vadd.s32 %v2059, 1
        %vm2065 = vcmp.gt.s32.totalorder %v2064, 0
        %v2066 = vsel %vm2065, %v2064, 0
        %v2067 = vshrl.u32 %v2066, 5
        %v2068 = vand.u32 %v2066, 31
        %v2069 = vsub.s32 32, %v2068
        %v2070 = vshrl.u32 683565275, %v2069
        %v2071 = vshll.u32 683565275, %v2068
        %v2072 = vshrl.u32 2475754826, %v2069
        %v2073 = vor.u32 %v2071, %v2072
        %v2074 = vshll.u32 2475754826, %v2068
        %v2075 = vshrl.u32 2131351028, %v2069
        %v2076 = vor.u32 %v2074, %v2075
        %v2077 = vshll.u32 2131351028, %v2068
        %v2078 = vshrl.u32 2102212464, %v2069
        %v2079 = vor.u32 %v2077, %v2078
        %v2080 = vshll.u32 2102212464, %v2068
        %v2081 = vshrl.u32 920167782, %v2069
        %v2082 = vor.u32 %v2080, %v2081
        %v2083 = vshll.u32 920167782, %v2068
        %v2084 = vshrl.u32 1326507024, %v2069
        %v2085 = vor.u32 %v2083, %v2084
        %vm2086 = vcmp.lt.s32.totalorder %v2067, 1
        %vm2087 = vcmp.lt.s32.totalorder %v2067, 2
        %vm2088 = vcmp.lt.s32.totalorder %v2067, 3
        %vm2089 = vcmp.lt.s32.totalorder %v2067, 4
        %v2090 = vsel %vm2086, %v2070, %v2073
        %v2091 = vsel %vm2089, %v2079, 2102212464
        %v2092 = vsel %vm2088, %v2076, %v2091
        %v2093 = vsel %vm2087, %v2090, %v2092
        %v2094 = vsel %vm2086, %v2073, %v2076
        %v2095 = vsel %vm2089, %v2082, 920167782
        %v2096 = vsel %vm2088, %v2079, %v2095
        %v2097 = vsel %vm2087, %v2094, %v2096
        %v2098 = vsel %vm2086, %v2076, %v2079
        %v2099 = vsel %vm2089, %v2085, 1326507024
        %v2100 = vsel %vm2088, %v2082, %v2099
        %v2101 = vsel %vm2087, %v2098, %v2100
        %v2102 = vshll.u32 %v2062, 8
        %v2103 = vmul.u32.u64.compose %v2102, %v2101
        %v2104 = vextract.low.u32 %v2103
        %v2105 = vextract.high.u32 %v2103
        %v2106 = vmul.u32.u64.compose %v2102, %v2097
        %v2107 = vextract.low.u32 %v2106
        %v2108 = vextract.high.u32 %v2106
        %v2109 = vmul.u32 %v2102, %v2093
        %v2110 = vadd.s32 %v2105, %v2107
        %vm2111 = vc.u32 %v2105, %v2107
        %v2112 = vadd.s32 %v2108, 1
        %v2113 = vsel %vm2111, %v2112, %v2108
        %v2114 = vadd.s32 %v2109, %v2113
        %v2115 = vadd.s32 %v2114, 536870912
        %v2116 = vshrl.u32 %v2115, 30
        %v2117 = vshll.u32 %v2116, 30
        %v2118 = vsub.s32 %v2114, %v2117
        %vm2119 = vcmp.lt.s32.totalorder %v2118, 0
        %v2120 = vsub.s32 0, %v2118
        %v2121 = vsel %vm2119, %v2120, %v2118
        %v2122 = vclz %v2121
        %v2123 = vsub.s32 %v2122, 2
        %vm2124 = vcmp.gt.s32.totalorder 0, %v2123
        %v2125 = vsel %vm2124, 0, %v2123
        %v2126 = vsub.s32 32, %v2125
        %v2127 = vshll.u32 %v2118, %v2125
        %v2128 = vshrl.u32 %v2110, %v2126
        %v2129 = vor.u32 %v2127, %v2128
        %v2130 = vsub.s32 4294967266, %v2125
        %v2131 = vadd.s32 %v2130, 127
        %v2132 = vshll.u32 %v2131, 23
        %v2133 = vor.u32 4788187, %v2132
        %v2134 = vand.u32 2147483647, %v2133
        %v2136 = vcvt.s32.f32 %v2129
        %v2137 = vmul.f32 %v2136, %v2134
        %v2138 = vxor.u32 %v2137, 2147483648
        %v2139 = vsel %vm2056, %v2138, %v2137
        %v2140 = vsub.s32 4, %v2116
        %v2141 = vsel %vm2056, %v2140, %v2116
        %v2142 = vsel %vm2055, %v1323, %v2139
        %v2143 = vsel %vm2055, 0, %v2141
        %v2144 = vcosq.f32.pop %v2142
        %v2145 = vsinq.f32.pop %v2142
        %vm2146 = vweird.f32 %v1323
        %v2147 = vadd.s32 %v2143, 3
        %v2148 = vand.u32 %v2147, 3
        %vm2149 = vcmp.lt.s32.totalorder %v2148, 2
        %vm2150 = vcmp.eq.s32.totalorder %v2148, 0
        %v2151 = vxor.u32 %v2145, 2147483648
        %v2152 = vsel %vm2150, %v2144, %v2151
        %vm2153 = vcmp.eq.s32.totalorder %v2148, 2
        %v2154 = vxor.u32 %v2144, 2147483648
        %v2155 = vsel %vm2153, %v2154, %v2145
        %v2156 = vsel %vm2149, %v2152, %v2155
        %v2157 = vsel %vm2146, nan, %v2156
        %v2158 = vmul.f32 %v1319, %v2053
        %v2159 = vmul.f32 %v1321, %v2157
        %vm2162 = vcmask 1046528
        %v2163 = vrot.slane %v1530, 1
        %v2164 = vrot.slane %v1531, 1
        %v2165 = vsel %vm2162, %v2163, %v2164
        %v2167 = vmul.f32 %v1229, %v2165
        %v2170 = vrot.slane %v1740, 1
        %v2171 = vrot.slane %v1741, 1
        %v2172 = vsel %vm2162, %v2170, %v2171
        %v2174 = vmul.f32 %v1231, %v2172
        %v2175 = vsub.f32 %v2167, %v2174
        %v2178 = vrot.slane %v1948, 1
        %v2179 = vrot.slane %v1949, 1
        %v2180 = vsel %vm2162, %v2178, %v2179
        %v2182 = vmul.f32 %v1300, %v2180
        %v2183 = vadd.f32 %v2175, %v2182
        %v2186 = vrot.slane %v2158, 1
        %v2187 = vrot.slane %v2159, 1
        %v2188 = vsel %vm2162, %v2186, %v2187
        %v2190 = vmul.f32 %v1302, %v2188
        %v2191 = vsub.f32 %v2183, %v2190
        %v2192 = vmul.f32 %v1229, %v2172
        %v2193 = vmul.f32 %v1231, %v2165
        %v2194 = vadd.f32 %v2192, %v2193
        %v2195 = vmul.f32 %v1300, %v2188
        %v2196 = vadd.f32 %v2194, %v2195
        %v2197 = vmul.f32 %v1302, %v2180
        %v2198 = vadd.f32 %v2196, %v2197
        %v2199 = vld [vmem:[%s3] sm:$0xff]
        %v2200 = vld [vmem:[%s3 + $0x8] sm:$0xff]
        %v2201 = vld [vmem:[%s3 + $0x10] sm:$0xff]
        %v2202 = vld [vmem:[%s3 + $0x18] sm:$0xff]
        %v2203 = vld [vmem:[%s3 + $0x20] sm:$0xff]
        %v2204 = vld [vmem:[%s3 + $0x28] sm:$0xff]
        %v2205 = vld [vmem:[%s3 + $0x30] sm:$0xff]
        %v2206 = vld [vmem:[%s3 + $0x38] sm:$0xff]
        %v2207 = vld [vmem:[%s3 + $0x40] sm:$0xff]
        %v2208 = vld [vmem:[%s3 + $0x48] sm:$0xff]
        %v2209 = vld [vmem:[%s3 + $0x50] sm:$0xff]
        %v2210 = vld [vmem:[%s3 + $0x58] sm:$0xff]
        %v2211 = vld [vmem:[%s3 + $0x60] sm:$0xff]
        %v2212 = vld [vmem:[%s3 + $0x68] sm:$0xff]
        %v2213 = vld [vmem:[%s3 + $0x70] sm:$0xff]
        %v2214 = vld [vmem:[%s3 + $0x78] sm:$0xff]
        %v2215 = vld [vmem:[%s3 + $0x80] sm:$0xff]
        %v2216 = vld [vmem:[%s3 + $0x88] sm:$0xff]
        %v2217 = vld [vmem:[%s3 + $0x90] sm:$0xff]
        %v2218 = vld [vmem:[%s3 + $0x98] sm:$0xff]
        %v2219 = vld [vmem:[%s3 + $0xa0] sm:$0xff]
        %v2220 = vld [vmem:[%s3 + $0xa8] sm:$0xff]
        %v2221 = vld [vmem:[%s3 + $0xb0] sm:$0xff]
        %v2222 = vld [vmem:[%s3 + $0xb8] sm:$0xff]
        %v2223 = vld [vmem:[%s3 + $0xc0] sm:$0xff]
        %v2224 = vld [vmem:[%s3 + $0xc8] sm:$0xff]
        %v2225 = vld [vmem:[%s3 + $0xd0] sm:$0xff]
        %v2226 = vld [vmem:[%s3 + $0xd8] sm:$0xff]
        %v2227 = vld [vmem:[%s3 + $0xe0] sm:$0xff]
        %v2228 = vld [vmem:[%s3 + $0xe8] sm:$0xff]
        %v2229 = vld [vmem:[%s3 + $0xf0] sm:$0xff]
        %v2230 = vld [vmem:[%s3 + $0xf8] sm:$0xff]
        %v2231 = vld [vmem:[%s3 + $0x100] sm:$0xff]
        %v2232 = vld [vmem:[%s3 + $0x108] sm:$0xff]
        %v2233 = vld [vmem:[%s3 + $0x110] sm:$0xff]
        %v2234 = vld [vmem:[%s3 + $0x118] sm:$0xff]
        %v2235 = vld [vmem:[%s3 + $0x120] sm:$0xff]
        %v2236 = vld [vmem:[%s3 + $0x128] sm:$0xff]
        %v2237 = vld [vmem:[%s3 + $0x130] sm:$0xff]
        %v2238 = vld [vmem:[%s3 + $0x138] sm:$0xff]
        %v2239 = vld [vmem:[%s3 + $0x140] sm:$0xff]
        %v2240 = vld [vmem:[%s3 + $0x148] sm:$0xff]
        %v2241 = vld [vmem:[%s3 + $0x150] sm:$0xff]
        %v2242 = vld [vmem:[%s3 + $0x158] sm:$0xff]
        %v2243 = vld [vmem:[%s3 + $0x160] sm:$0xff]
        %v2244 = vld [vmem:[%s3 + $0x168] sm:$0xff]
        %v2245 = vld [vmem:[%s3 + $0x170] sm:$0xff]
        %v2246 = vld [vmem:[%s3 + $0x178] sm:$0xff]
        %v2247 = vld [vmem:[%s3 + $0x180] sm:$0xff]
        %v2248 = vld [vmem:[%s3 + $0x188] sm:$0xff]
        %v2249 = vld [vmem:[%s3 + $0x190] sm:$0xff]
        %v2250 = vld [vmem:[%s3 + $0x198] sm:$0xff]
        %v2251 = vld [vmem:[%s3 + $0x1a0] sm:$0xff]
        %v2252 = vld [vmem:[%s3 + $0x1a8] sm:$0xff]
        %v2253 = vld [vmem:[%s3 + $0x1b0] sm:$0xff]
        %v2254 = vld [vmem:[%s3 + $0x1b8] sm:$0xff]
        %v2255 = vld [vmem:[%s3 + $0x1c0] sm:$0xff]
        %v2256 = vld [vmem:[%s3 + $0x1c8] sm:$0xff]
        %v2257 = vld [vmem:[%s3 + $0x1d0] sm:$0xff]
        %v2258 = vld [vmem:[%s3 + $0x1d8] sm:$0xff]
        %v2259 = vld [vmem:[%s3 + $0x1e0] sm:$0xff]
        %v2260 = vld [vmem:[%s3 + $0x1e8] sm:$0xff]
        %v2261 = vld [vmem:[%s3 + $0x1f0] sm:$0xff]
        %v2262 = vld [vmem:[%s3 + $0x1f8] sm:$0xff]
        %2263 = vmatprep.subr.mxu0 0.0
        %2264 = vmatpush1.msra.mxu0 %v2214
        %2265 = vmatprep.subr.mxu0 0.0
        %2266 = vmatpush1.msra.mxu0 %v2213
        %2267 = vmatprep.subr.mxu0 0.0
        %2268 = vmatpush1.msra.mxu0 %v2212
        %2269 = vmatprep.subr.mxu0 0.0
        %2270 = vmatpush1.msra.mxu0 %v2211
        %2271 = vmatprep.subr.mxu0 0.0
        %2272 = vmatpush1.msra.mxu0 %v2210
        %2273 = vmatprep.subr.mxu0 0.0
        %2274 = vmatpush1.msra.mxu0 %v2209
        %2275 = vmatprep.subr.mxu0 0.0
        %2276 = vmatpush1.msra.mxu0 %v2208
        %2277 = vmatprep.subr.mxu0 0.0
        %2278 = vmatpush1.msra.mxu0 %v2207
        %2279 = vmatprep.subr.mxu0 0.0
        %2280 = vmatpush1.msra.mxu0 %v2206
        %2281 = vmatprep.subr.mxu0 0.0
        %2282 = vmatpush1.msra.mxu0 %v2205
        %2283 = vmatprep.subr.mxu0 0.0
        %2284 = vmatpush1.msra.mxu0 %v2204
        %2285 = vmatprep.subr.mxu0 0.0
        %2286 = vmatpush1.msra.mxu0 %v2203
        %2287 = vmatprep.subr.mxu0 0.0
        %2288 = vmatpush1.msra.mxu0 %v2202
        %2289 = vmatprep.subr.mxu0 0.0
        %2290 = vmatpush1.msra.mxu0 %v2201
        %2291 = vmatprep.subr.mxu0 0.0
        %2292 = vmatpush1.msra.mxu0 %v2200
        %2293 = vmatprep.subr.mxu0 0.0
        %2294 = vmatpush1.msra.mxu0 %v2199
        %2295 = vmatprep.subr.mxu0 0.0
        %2296 = vmatpush2.msra.mxu0 %v2230
        %2297 = vmatprep.subr.mxu0 0.0
        %2298 = vmatpush2.msra.mxu0 %v2229
        %2299 = vmatprep.subr.mxu0 0.0
        %2300 = vmatpush2.msra.mxu0 %v2228
        %2301 = vmatprep.subr.mxu0 0.0
        %2302 = vmatpush2.msra.mxu0 %v2227
        %2303 = vmatprep.subr.mxu0 0.0
        %2304 = vmatpush2.msra.mxu0 %v2226
        %2305 = vmatprep.subr.mxu0 0.0
        %2306 = vmatpush2.msra.mxu0 %v2225
        %2307 = vmatprep.subr.mxu0 0.0
        %2308 = vmatpush2.msra.mxu0 %v2224
        %2309 = vmatprep.subr.mxu0 0.0
        %2310 = vmatpush2.msra.mxu0 %v2223
        %2311 = vmatprep.subr.mxu0 0.0
        %2312 = vmatpush2.msra.mxu0 %v2222
        %2313 = vmatprep.subr.mxu0 0.0
        %2314 = vmatpush2.msra.mxu0 %v2221
        %2315 = vmatprep.subr.mxu0 0.0
        %2316 = vmatpush2.msra.mxu0 %v2220
        %2317 = vmatprep.subr.mxu0 0.0
        %2318 = vmatpush2.msra.mxu0 %v2219
        %2319 = vmatprep.subr.mxu0 0.0
        %2320 = vmatpush2.msra.mxu0 %v2218
        %2321 = vmatprep.subr.mxu0 0.0
        %2322 = vmatpush2.msra.mxu0 %v2217
        %2323 = vmatprep.subr.mxu0 0.0
        %2324 = vmatpush2.msra.mxu0 %v2216
        %2325 = vmatprep.subr.mxu0 0.0
        %2326 = vmatpush2.msra.mxu0 %v2215
        %2327 = vmatprep.mubr.f32.mxu0 %v1015
        %2328 = vmatmul.mubr.f32.gmra.mxu0 %v1008
        %v2329 = vpop.f32.mrf.mxu0
        %v2330 = vadd.f32 0.0, %v2329
        %v2331 = vpop.f32.mrf.mxu0
        %2332 = vdwg.mxu0
        %2333 = vmatprep.subr.mxu0 0.0
        %2334 = vmatpush1.msra.mxu0 %v2246
        %2335 = vmatprep.subr.mxu0 0.0
        %2336 = vmatpush1.msra.mxu0 %v2245
        %2337 = vmatprep.subr.mxu0 0.0
        %2338 = vmatpush1.msra.mxu0 %v2244
        %2339 = vmatprep.subr.mxu0 0.0
        %2340 = vmatpush1.msra.mxu0 %v2243
        %2341 = vmatprep.subr.mxu0 0.0
        %2342 = vmatpush1.msra.mxu0 %v2242
        %2343 = vmatprep.subr.mxu0 0.0
        %2344 = vmatpush1.msra.mxu0 %v2241
        %2345 = vmatprep.subr.mxu0 0.0
        %2346 = vmatpush1.msra.mxu0 %v2240
        %2347 = vmatprep.subr.mxu0 0.0
        %2348 = vmatpush1.msra.mxu0 %v2239
        %2349 = vmatprep.subr.mxu0 0.0
        %2350 = vmatpush1.msra.mxu0 %v2238
        %2351 = vmatprep.subr.mxu0 0.0
        %2352 = vmatpush1.msra.mxu0 %v2237
        %2353 = vmatprep.subr.mxu0 0.0
        %2354 = vmatpush1.msra.mxu0 %v2236
        %2355 = vmatprep.subr.mxu0 0.0
        %2356 = vmatpush1.msra.mxu0 %v2235
        %2357 = vmatprep.subr.mxu0 0.0
        %2358 = vmatpush1.msra.mxu0 %v2234
        %2359 = vmatprep.subr.mxu0 0.0
        %2360 = vmatpush1.msra.mxu0 %v2233
        %2361 = vmatprep.subr.mxu0 0.0
        %2362 = vmatpush1.msra.mxu0 %v2232
        %2363 = vmatprep.subr.mxu0 0.0
        %2364 = vmatpush1.msra.mxu0 %v2231
        %2365 = vmatprep.subr.mxu0 0.0
        %2366 = vmatpush2.msra.mxu0 %v2262
        %2367 = vmatprep.subr.mxu0 0.0
        %2368 = vmatpush2.msra.mxu0 %v2261
        %2369 = vmatprep.subr.mxu0 0.0
        %2370 = vmatpush2.msra.mxu0 %v2260
        %2371 = vmatprep.subr.mxu0 0.0
        %2372 = vmatpush2.msra.mxu0 %v2259
        %2373 = vmatprep.subr.mxu0 0.0
        %2374 = vmatpush2.msra.mxu0 %v2258
        %2375 = vmatprep.subr.mxu0 0.0
        %2376 = vmatpush2.msra.mxu0 %v2257
        %2377 = vmatprep.subr.mxu0 0.0
        %2378 = vmatpush2.msra.mxu0 %v2256
        %2379 = vmatprep.subr.mxu0 0.0
        %2380 = vmatpush2.msra.mxu0 %v2255
        %2381 = vmatprep.subr.mxu0 0.0
        %2382 = vmatpush2.msra.mxu0 %v2254
        %2383 = vmatprep.subr.mxu0 0.0
        %2384 = vmatpush2.msra.mxu0 %v2253
        %2385 = vmatprep.subr.mxu0 0.0
        %2386 = vmatpush2.msra.mxu0 %v2252
        %2387 = vmatprep.subr.mxu0 0.0
        %2388 = vmatpush2.msra.mxu0 %v2251
        %2389 = vmatprep.subr.mxu0 0.0
        %2390 = vmatpush2.msra.mxu0 %v2250
        %2391 = vmatprep.subr.mxu0 0.0
        %2392 = vmatpush2.msra.mxu0 %v2249
        %2393 = vmatprep.subr.mxu0 0.0
        %2394 = vmatpush2.msra.mxu0 %v2248
        %2395 = vmatprep.subr.mxu0 0.0
        %2396 = vmatpush2.msra.mxu0 %v2247
        %2397 = vmatprep.mubr.f32.mxu0 %v2198
        %2398 = vmatmul.mubr.f32.gmra.mxu0 %v2191
        %v2399 = vpop.f32.mrf.mxu0
        %v2400 = vadd.f32 %v2330, %v2399
        %v2401 = vpop.f32.mrf.mxu0
        %2402 = vdwg.mxu0
        %vm2403 = vcmask 261120
        %2404 = vst.msk [vmem:[%s205] sm:$0xff] %vm2403, %v2400
        %s2405 = sand.u32 %s120, 1
        %s2406 = scalar_lea.sflag [#allocation3], %s2405
        %s2407 = sand.u32 %s120, 1
        %s2408 = smul.addr %s2407, 8
        %s2409 = scalar_lea.vmem [#allocation2], %s2408
        // Predicated region
        $region37: #{tpu_custom_call.1} parent=35 // pred_check
          %p2410 = pneg %p130
        $region38: #{tpu_custom_call.1} parent=35 // pred_check_branch
          %2412 = sbr.rel (%p2410) target = $region40
        $region39: #{tpu_custom_call.1} parent=35 // pred_region
          %s2414 = ssub.s32 128, 128
          %2415 = vsyncadd %s2406, %s2414
          %s2416 = smul.addr %s18, 128
          %s2417 = scalar_lea.hbm %s4, %s2416
          %s2419 = sshll.u32 %s2409, 4
          %s2420 = int_to_ptr.vmem [resolvable:$true] %s2419
          %2422 = dma.vmem_to_hbm [thread:$0]  %s2420, 128, %s2417, %s2406
        $region40: #{tpu_custom_call.1} parent=35 // pred_fallthru
          _
      $region36: #{tpu_custom_call.1} parent=5 // pred_fallthru
        _
      %p2423 = scmp.le.s32.totalorder 2, %s13
      // Predicated region
      $region41: #{tpu_custom_call.1} parent=5 // pred_check
        %p2424 = pneg %p2423
      $region42: #{tpu_custom_call.1} parent=5 // pred_check_branch
        %2426 = sbr.rel (%p2424) target = $region44
      $region43: #{tpu_custom_call.1} parent=5 // pred_region
        %s2427 = ssub.s32 %s13, 2
        // Predicated region
        $region45: #{tpu_custom_call.1} parent=43 // pred_check
          %p2428 = pneg %p136
        $region46: #{tpu_custom_call.1} parent=43 // pred_check_branch
          %2430 = sbr.rel (%p2428) target = $region48
        $region47: #{tpu_custom_call.1} parent=43 // pred_region
          %s2431 = sand.u32 %s121, 1
          %s2432 = scalar_lea.sflag [#allocation3], %s2431
          %s2433 = sand.u32 %s121, 1
          %s2434 = smul.addr %s2433, 8
          %s2435 = scalar_lea.vmem [#allocation2], %s2434
          %2436 = dma.done %s2432, 128
        $region48: #{tpu_custom_call.1} parent=43 // pred_fallthru
          _
      $region44: #{tpu_custom_call.1} parent=5 // pred_fallthru
        _
    $region6: #{tpu_custom_call.1} parent=1 // loop_footer
      %s17 = sadd.s32 1, %s13
    $region7: #{tpu_custom_call.1} parent=1 // loop_footer_branch
      %12 = sbr.rel target = $region3
    $region8: #{tpu_custom_call.1} parent=1 // loop_exit
      _
    %2437 = vsyncpa [#allocation3], 1
    %s2438 = scalar_lea.sflag [#allocation3], 1
    %2439 = vsyncpa %s2438, 1

</llo_original>
